<compile_context>
chip_gen: v7x
topology: tpu7x:2x2x1
jax: 0.10.0
libtpu: 0.0.40
codegen_flags: <defaults>
</compile_context>

<pallas_src>
from functools import partial

import jax
import jax.numpy as jnp
from jax.experimental import pallas as pl
from jax.experimental.pallas import tpu as pltpu


def _round_up(x, m):
    return ((x + m - 1) // m) * m


# ----------------------------------------------------------------------------
# Fused decoder-step kernel
# ----------------------------------------------------------------------------
def _decoder_step_kernel(inp_ref, h_ref, c_ref,
                         w_emb_ref, b_emb_ref,
                         w_fc_ref, b_fc_ref,
                         *rest, n_layers, hid_pad):
    # rest = [w_ih_0..w_ih_{L-1}, w_hh_0..w_hh_{L-1}, b_0..b_{L-1},
    #         pred_ref, h_out_ref, c_out_ref]
    w_ih_refs = rest[0 * n_layers:1 * n_layers]
    w_hh_refs = rest[1 * n_layers:2 * n_layers]
    b_refs = rest[2 * n_layers:3 * n_layers]
    pred_ref, h_out_ref, c_out_ref = rest[3 * n_layers:]

    Hp = hid_pad
    f32 = jnp.float32
    mm_dtype = w_emb_ref.dtype            # matmul-operand dtype (f32 or bf16)

    # --- embedding Linear (dropout = identity at inference) ------------------
    x = jnp.dot(inp_ref[...].astype(mm_dtype), w_emb_ref[...],
                preferred_element_type=f32)
    x = x + b_emb_ref[...]                                   # (bm, emb_dim) f32

    # --- stacked LSTM layers, seq_len == 1 (statically unrolled) -------------
    for k in range(n_layers):
        h_k = h_ref[k].astype(f32)                           # (bm, Hp)
        c_k = c_ref[k].astype(f32)                           # (bm, Hp)

        # split matmuls (no concat / pad): x @ W_ih + h @ W_hh + (b_ih + b_hh)
        gates = jnp.dot(x.astype(mm_dtype), w_ih_refs[k][...],
                        preferred_element_type=f32)
        gates = gates + jnp.dot(h_k.astype(mm_dtype), w_hh_refs[k][...],
                                preferred_element_type=f32)
        gates = gates + b_refs[k][...]                       # (bm, 4*Hp) f32

        # full-vreg aligned 128-lane gate slices (no cross-lane moves)
        i = jax.nn.sigmoid(gates[:, 0 * Hp:1 * Hp])
        f = jax.nn.sigmoid(gates[:, 1 * Hp:2 * Hp])
        g = jnp.tanh(gates[:, 2 * Hp:3 * Hp])
        o = jax.nn.sigmoid(gates[:, 3 * Hp:4 * Hp])

        c_new = f * c_k + i * g                              # f32 state math
        h_new = o * jnp.tanh(c_new)

        c_out_ref[k] = c_new.astype(c_out_ref.dtype)         # lane-dense store
        h_out_ref[k] = h_new.astype(h_out_ref.dtype)
        x = h_new                                            # inter-layer dropout = identity

    # --- fc_out head (lane-padded output width) ------------------------------
    pred = jnp.dot(x.astype(mm_dtype), w_fc_ref[...],
                   preferred_element_type=f32) + b_fc_ref[...]
    pred_ref[...] = pred.astype(pred_ref.dtype)


# ----------------------------------------------------------------------------
# Parameter packing (wrapper-side, done once)
# ----------------------------------------------------------------------------
def pack_params(params, *, emb_dim, hid_dim, n_layers, matmul_dtype=jnp.float32):
    """Lane-pads each gate block / the hidden dim / the fc output to 128 lanes
    and casts matmul weights to `matmul_dtype`.  Biases stay f32."""
    H = hid_dim
    Hp = _round_up(H, 128)
    out_dim = params["fc_w_t"].shape[1]
    out_pad = _round_up(out_dim, 128)
    f32 = jnp.float32

    def pad_gates(w):                      # (in, 4H) -> (in, 4*Hp)
        blocks = [w[:, j * H:(j + 1) * H] for j in range(4)]
        return jnp.concatenate(
            [jnp.pad(b, ((0, 0), (0, Hp - H))) for b in blocks], axis=1)

    w_ih, w_hh, b_lstm = [], [], []
    for k in range(n_layers):
        w_ih_t = params["w_ih_t"][k]                         # (in_k, 4H)
        in_k = w_ih_t.shape[0]
        in_k_pad = emb_dim if k == 0 else Hp                 # layer>0 input is lane-padded h
        wi = jnp.pad(pad_gates(w_ih_t), ((0, in_k_pad - in_k), (0, 0)))
        wh = jnp.pad(pad_gates(params["w_hh_t"][k]), ((0, Hp - H), (0, 0)))
        bias = pad_gates(params["b_lstm"][k].reshape(1, 4 * H))
        w_ih.append(wi.astype(matmul_dtype))
        w_hh.append(wh.astype(matmul_dtype))
        b_lstm.append(bias.astype(f32))

    w_fc = jnp.pad(params["fc_w_t"], ((0, Hp - H), (0, out_pad - out_dim)))
    b_fc = jnp.pad(params["fc_b"].reshape(1, -1), ((0, 0), (0, out_pad - out_dim)))

    return {
        "w_emb": params["emb_w_t"].astype(matmul_dtype),     # (out_dim, emb_dim)
        "b_emb": params["emb_b"].reshape(1, -1).astype(f32), # (1, emb_dim)
        "w_ih": w_ih,                                        # list[(in_pad_k, 4*Hp)]
        "w_hh": w_hh,                                        # list[(Hp, 4*Hp)]
        "b_lstm": b_lstm,                                    # list[(1, 4*Hp)] f32
        "w_fc": w_fc.astype(matmul_dtype),                   # (Hp, out_pad)
        "b_fc": b_fc.astype(f32),                            # (1, out_pad)
    }


# ----------------------------------------------------------------------------
# DecoderLSTM forward (inference: dropout is identity) — single fused kernel
# ----------------------------------------------------------------------------
@jax.jit
def decoder_lstm_forward(packed, inp, hidden, cell):
    """inp: (B, output_dim); hidden/cell: (n_layers, B, hid_dim).

    Equivalent to PyTorch:
        input = input.unsqueeze(0)                    # seq_len = 1
        embedded = dropout(embedding(input))
        output, (hidden, cell) = rnn(embedded, (hidden, cell))
        prediction = fc_out(output.squeeze(0))
    """
    B, out_dim = inp.shape
    n_layers, _, H = hidden.shape
    Hp = packed["w_fc"].shape[0]
    out_pad = packed["w_fc"].shape[1]

    # batch padding / tiling: tiles of up to 128 rows, sharded "parallel"
    B_pad = _round_up(B, 8)
    if B_pad > 128:
        B_pad = _round_up(B, 128)
        bm = 128
    else:
        bm = B_pad
    grid = (B_pad // bm,)

    inp_p = jnp.pad(inp, ((0, B_pad - B), (0, 0)))
    hid_p = jnp.pad(hidden, ((0, 0), (0, B_pad - B), (0, Hp - H)))
    cel_p = jnp.pad(cell, ((0, 0), (0, B_pad - B), (0, Hp - H)))

    kernel = partial(_decoder_step_kernel, n_layers=n_layers, hid_pad=Hp)

    def const_spec(arr):                  # weights: same block every grid step
        return pl.BlockSpec(arr.shape, lambda i: (0,) * arr.ndim)

    state_spec = pl.BlockSpec((n_layers, bm, Hp), lambda i: (0, i, 0))

    in_specs = [
        pl.BlockSpec((bm, out_dim), lambda i: (i, 0)),       # inp
        state_spec,                                          # hidden
        state_spec,                                          # cell
        const_spec(packed["w_emb"]),
        const_spec(packed["b_emb"]),
        const_spec(packed["w_fc"]),
        const_spec(packed["b_fc"]),
    ]
    in_specs += [const_spec(w) for w in packed["w_ih"]]
    in_specs += [const_spec(w) for w in packed["w_hh"]]
    in_specs += [const_spec(b) for b in packed["b_lstm"]]

    out_specs = (
        pl.BlockSpec((bm, out_pad), lambda i: (i, 0)),
        state_spec,
        state_spec,
    )

    pred_p, h_new, c_new = pl.pallas_call(
        kernel,
        grid=grid,
        out_shape=(
            jax.ShapeDtypeStruct((B_pad, out_pad), inp.dtype),
            jax.ShapeDtypeStruct((n_layers, B_pad, Hp), hidden.dtype),
            jax.ShapeDtypeStruct((n_layers, B_pad, Hp), cell.dtype),
        ),
        in_specs=in_specs,
        out_specs=out_specs,
        # in-place state update: padded hidden/cell alias the new hidden/cell
        input_output_aliases={1: 1, 2: 2},
        compiler_params=pltpu.CompilerParams(
            dimension_semantics=("parallel",)),
    )(inp_p, hid_p, cel_p,
      packed["w_emb"], packed["b_emb"], packed["w_fc"], packed["b_fc"],
      *packed["w_ih"], *packed["w_hh"], *packed["b_lstm"])

    return pred_p[:B, :out_dim], h_new[:, :B, :H], c_new[:, :B, :H]


# ----------------------------------------------------------------------------
# Pure-JAX reference (for correctness check), uses the un-packed params
# ----------------------------------------------------------------------------
def decoder_lstm_ref(params, inp, hidden, cell):
    n_layers = hidden.shape[0]
    H = hidden.shape[-1]
    x = inp @ params["emb_w_t"] + params["emb_b"]
    new_h, new_c = [], []
    for k in range(n_layers):
        gates = (x @ params["w_ih_t"][k]
                 + hidden[k] @ params["w_hh_t"][k]
                 + params["b_lstm"][k])
        i = jax.nn.sigmoid(gates[:, 0 * H:1 * H])
        f = jax.nn.sigmoid(gates[:, 1 * H:2 * H])
        g = jnp.tanh(gates[:, 2 * H:3 * H])
        o = jax.nn.sigmoid(gates[:, 3 * H:4 * H])
        c_k = f * cell[k] + i * g
        h_k = o * jnp.tanh(c_k)
        new_h.append(h_k)
        new_c.append(c_k)
        x = h_k
    pred = x @ params["fc_w_t"] + params["fc_b"]
    return pred, jnp.stack(new_h), jnp.stack(new_c)


# ----------------------------------------------------------------------------
# Main
# ----------------------------------------------------------------------------
if __name__ == "__main__":
    # Module config (bidirectional=False, dropout inactive at inference).
    output_dim = 16
    emb_dim = 32
    hid_dim = 32
    n_layers = 2
    batch = 4

    key = jax.random.PRNGKey(0)
    keys = jax.random.split(key, 16)
    kit = iter(keys)

    def init(shape, k):
        return jax.random.normal(k, shape, dtype=jnp.float32) * 0.1

    params = {
        # embedding: nn.Linear(output_dim, emb_dim) — stored transposed
        "emb_w_t": init((output_dim, emb_dim), next(kit)),
        "emb_b": init((emb_dim,), next(kit)),
        # LSTM per-layer weights (transposed: (in, 4H), (H, 4H)); combined
        # bias b_ih + b_hh.  Gate order i, f, g, o (PyTorch).
        "w_ih_t": [
            init((emb_dim if k == 0 else hid_dim, 4 * hid_dim), next(kit))
            for k in range(n_layers)
        ],
        "w_hh_t": [init((hid_dim, 4 * hid_dim), next(kit)) for _ in range(n_layers)],
        "b_lstm": [init((4 * hid_dim,), next(kit)) for _ in range(n_layers)],
        # fc_out: nn.Linear(hid_dim, output_dim) — stored transposed
        "fc_w_t": init((hid_dim, output_dim), next(kit)),
        "fc_b": init((output_dim,), next(kit)),
    }

    inp = jax.random.normal(next(kit), (batch, output_dim), dtype=jnp.float32)
    hidden = jax.random.normal(next(kit), (n_layers, batch, hid_dim), dtype=jnp.float32)
    cell = jax.random.normal(next(kit), (n_layers, batch, hid_dim), dtype=jnp.float32)

    pred_r, h_r, c_r = decoder_lstm_ref(params, inp, hidden, cell)

    # --- f32 matmul path: tight numeric check --------------------------------
    packed_f32 = pack_params(params, emb_dim=emb_dim, hid_dim=hid_dim,
                             n_layers=n_layers, matmul_dtype=jnp.float32)
    pred, h_new, c_new = decoder_lstm_forward(packed_f32, inp, hidden, cell)
    jax.block_until_ready((pred, h_new, c_new))

    assert pred.shape == (batch, output_dim)
    assert h_new.shape == (n_layers, batch, hid_dim)
    assert c_new.shape == (n_layers, batch, hid_dim)
    assert jnp.allclose(pred, pred_r, atol=1e-5, rtol=1e-5)
    assert jnp.allclose(h_new, h_r, atol=1e-5, rtol=1e-5)
    assert jnp.allclose(c_new, c_r, atol=1e-5, rtol=1e-5)

    # --- bf16 matmul-operand path (v6e/v7x MXU): looser numeric check --------
    packed_bf16 = pack_params(params, emb_dim=emb_dim, hid_dim=hid_dim,
                              n_layers=n_layers, matmul_dtype=jnp.bfloat16)
    pred_b, h_b, c_b = decoder_lstm_forward(packed_bf16, inp, hidden, cell)
    jax.block_until_ready((pred_b, h_b, c_b))

    assert jnp.allclose(pred_b, pred_r, atol=5e-2, rtol=5e-2)
    assert jnp.allclose(h_b, h_r, atol=5e-2, rtol=5e-2)
    assert jnp.allclose(c_b, c_r, atol=5e-2, rtol=5e-2)

    print("KERNEL_OK")
</pallas_src>

<mosaic_0001>
module attributes {stable_mosaic.version = 11 : i64} {
  func.func @_decoder_step_kernel(%arg0: i32, %arg1: memref<8x16xf32, #tpu.memory_space<vmem>>, %arg2: memref<2x8x128xf32, #tpu.memory_space<vmem>>, %arg3: memref<2x8x128xf32, #tpu.memory_space<vmem>>, %arg4: memref<16x32xf32, #tpu.memory_space<vmem>>, %arg5: memref<1x32xf32, #tpu.memory_space<vmem>>, %arg6: memref<128x128xf32, #tpu.memory_space<vmem>>, %arg7: memref<1x128xf32, #tpu.memory_space<vmem>>, %arg8: memref<32x512xf32, #tpu.memory_space<vmem>>, %arg9: memref<128x512xf32, #tpu.memory_space<vmem>>, %arg10: memref<128x512xf32, #tpu.memory_space<vmem>>, %arg11: memref<128x512xf32, #tpu.memory_space<vmem>>, %arg12: memref<1x512xf32, #tpu.memory_space<vmem>>, %arg13: memref<1x512xf32, #tpu.memory_space<vmem>>, %arg14: memref<8x128xf32, #tpu.memory_space<vmem>>, %arg15: memref<2x8x128xf32, #tpu.memory_space<vmem>>, %arg16: memref<2x8x128xf32, #tpu.memory_space<vmem>>) attributes {dimension_semantics = [#tpu.dimension_semantics<parallel>], iteration_bounds = array<i64: 1>, scalar_prefetch = 0 : i64, scratch_operands = 0 : i64, tpu.core_type = #tpu.core_type<tc>, window_params = [{transform_indices = @transform_0, window_bounds = array<i64: 8, 16>}, {transform_indices = @transform_1, window_bounds = array<i64: 2, 8, 128>}, {transform_indices = @transform_2, window_bounds = array<i64: 2, 8, 128>}, {pipeline_mode = #tpu.pipeline_mode<synchronous>, transform_indices = @transform_3, window_bounds = array<i64: 16, 32>}, {pipeline_mode = #tpu.pipeline_mode<synchronous>, transform_indices = @transform_4, window_bounds = array<i64: 1, 32>}, {pipeline_mode = #tpu.pipeline_mode<synchronous>, transform_indices = @transform_5, window_bounds = array<i64: 128, 128>}, {pipeline_mode = #tpu.pipeline_mode<synchronous>, transform_indices = @transform_6, window_bounds = array<i64: 1, 128>}, {pipeline_mode = #tpu.pipeline_mode<synchronous>, transform_indices = @transform_7, window_bounds = array<i64: 32, 512>}, {pipeline_mode = #tpu.pipeline_mode<synchronous>, transform_indices = @transform_8, window_bounds = array<i64: 128, 512>}, {pipeline_mode = #tpu.pipeline_mode<synchronous>, transform_indices = @transform_9, window_bounds = array<i64: 128, 512>}, {pipeline_mode = #tpu.pipeline_mode<synchronous>, transform_indices = @transform_10, window_bounds = array<i64: 128, 512>}, {pipeline_mode = #tpu.pipeline_mode<synchronous>, transform_indices = @transform_11, window_bounds = array<i64: 1, 512>}, {pipeline_mode = #tpu.pipeline_mode<synchronous>, transform_indices = @transform_12, window_bounds = array<i64: 1, 512>}, {transform_indices = @transform_13, window_bounds = array<i64: 8, 128>}, {transform_indices = @transform_14, window_bounds = array<i64: 2, 8, 128>}, {transform_indices = @transform_15, window_bounds = array<i64: 2, 8, 128>}]} {
    %c0 = arith.constant 0 : index
    %c0_0 = arith.constant 0 : index
    %0 = vector.load %arg1[%c0, %c0_0] : memref<8x16xf32, #tpu.memory_space<vmem>>, vector<8x16xf32>
    %c0_1 = arith.constant 0 : index
    %c0_2 = arith.constant 0 : index
    %1 = vector.load %arg4[%c0_1, %c0_2] : memref<16x32xf32, #tpu.memory_space<vmem>>, vector<16x32xf32>
    %cst = arith.constant dense<0.000000e+00> : vector<8x32xf32>
    %2 = tpu.matmul %0, %1, %cst {dimension_numbers = #tpu.dot_dimension_numbers<[1], [0], [0], [1], [0, 0, 1, 1], [], []>} : vector<8x16xf32>, vector<16x32xf32>, vector<8x32xf32> -> vector<8x32xf32>
    %c0_3 = arith.constant 0 : index
    %c0_4 = arith.constant 0 : index
    %3 = vector.load %arg5[%c0_3, %c0_4] : memref<1x32xf32, #tpu.memory_space<vmem>>, vector<1x32xf32>
    %4 = vector.broadcast %3 : vector<1x32xf32> to vector<8x32xf32>
    %5 = arith.addf %2, %4 : vector<8x32xf32>
    %c0_5 = arith.constant 0 : index
    %c0_6 = arith.constant 0 : index
    %c0_7 = arith.constant 0 : index
    %6 = vector.load %arg2[%c0_5, %c0_6, %c0_7] : memref<2x8x128xf32, #tpu.memory_space<vmem>>, vector<1x8x128xf32>
    %7 = vector.shape_cast %6 : vector<1x8x128xf32> to vector<8x128xf32>
    %c0_8 = arith.constant 0 : index
    %c0_9 = arith.constant 0 : index
    %c0_10 = arith.constant 0 : index
    %8 = vector.load %arg3[%c0_8, %c0_9, %c0_10] : memref<2x8x128xf32, #tpu.memory_space<vmem>>, vector<1x8x128xf32>
    %9 = vector.shape_cast %8 : vector<1x8x128xf32> to vector<8x128xf32>
    %c0_11 = arith.constant 0 : index
    %c0_12 = arith.constant 0 : index
    %10 = vector.load %arg8[%c0_11, %c0_12] : memref<32x512xf32, #tpu.memory_space<vmem>>, vector<32x512xf32>
    %cst_13 = arith.constant dense<0.000000e+00> : vector<8x512xf32>
    %11 = tpu.matmul %5, %10, %cst_13 {dimension_numbers = #tpu.dot_dimension_numbers<[1], [0], [0], [1], [0, 0, 1, 1], [], []>} : vector<8x32xf32>, vector<32x512xf32>, vector<8x512xf32> -> vector<8x512xf32>
    %c0_14 = arith.constant 0 : index
    %c0_15 = arith.constant 0 : index
    %12 = vector.load %arg10[%c0_14, %c0_15] : memref<128x512xf32, #tpu.memory_space<vmem>>, vector<128x512xf32>
    %cst_16 = arith.constant dense<0.000000e+00> : vector<8x512xf32>
    %13 = tpu.matmul %7, %12, %cst_16 {dimension_numbers = #tpu.dot_dimension_numbers<[1], [0], [0], [1], [0, 0, 1, 1], [], []>} : vector<8x128xf32>, vector<128x512xf32>, vector<8x512xf32> -> vector<8x512xf32>
    %14 = arith.addf %11, %13 : vector<8x512xf32>
    %c0_17 = arith.constant 0 : index
    %c0_18 = arith.constant 0 : index
    %15 = vector.load %arg12[%c0_17, %c0_18] : memref<1x512xf32, #tpu.memory_space<vmem>>, vector<1x512xf32>
    %16 = vector.broadcast %15 : vector<1x512xf32> to vector<8x512xf32>
    %17 = arith.addf %14, %16 : vector<8x512xf32>
    %18 = vector.extract_strided_slice %17 {offsets = [0, 0], sizes = [8, 128], strides = [1, 1]} : vector<8x512xf32> to vector<8x128xf32>
    %19 = arith.negf %18 : vector<8x128xf32>
    %20 = math.exp %19 : vector<8x128xf32>
    %cst_19 = arith.constant 1.000000e+00 : f32
    %21 = vector.broadcast %cst_19 : f32 to vector<8x128xf32>
    %22 = arith.addf %21, %20 : vector<8x128xf32>
    %23 = arith.divf %21, %22 : vector<8x128xf32>
    %24 = vector.extract_strided_slice %17 {offsets = [0, 128], sizes = [8, 128], strides = [1, 1]} : vector<8x512xf32> to vector<8x128xf32>
    %25 = arith.negf %24 : vector<8x128xf32>
    %26 = math.exp %25 : vector<8x128xf32>
    %cst_20 = arith.constant 1.000000e+00 : f32
    %27 = vector.broadcast %cst_20 : f32 to vector<8x128xf32>
    %28 = arith.addf %27, %26 : vector<8x128xf32>
    %29 = arith.divf %27, %28 : vector<8x128xf32>
    %30 = vector.extract_strided_slice %17 {offsets = [0, 256], sizes = [8, 128], strides = [1, 1]} : vector<8x512xf32> to vector<8x128xf32>
    %31 = math.tanh %30 : vector<8x128xf32>
    %32 = vector.extract_strided_slice %17 {offsets = [0, 384], sizes = [8, 128], strides = [1, 1]} : vector<8x512xf32> to vector<8x128xf32>
    %33 = arith.negf %32 : vector<8x128xf32>
    %34 = math.exp %33 : vector<8x128xf32>
    %cst_21 = arith.constant 1.000000e+00 : f32
    %35 = vector.broadcast %cst_21 : f32 to vector<8x128xf32>
    %36 = arith.addf %35, %34 : vector<8x128xf32>
    %37 = arith.divf %35, %36 : vector<8x128xf32>
    %38 = arith.mulf %29, %9 : vector<8x128xf32>
    %39 = arith.mulf %23, %31 : vector<8x128xf32>
    %40 = arith.addf %38, %39 : vector<8x128xf32>
    %41 = math.tanh %40 : vector<8x128xf32>
    %42 = arith.mulf %37, %41 : vector<8x128xf32>
    %c0_22 = arith.constant 0 : index
    %c0_23 = arith.constant 0 : index
    %c0_24 = arith.constant 0 : index
    %43 = vector.load %arg16[%c0_22, %c0_23, %c0_24] : memref<2x8x128xf32, #tpu.memory_space<vmem>>, vector<1x8x128xf32>
    %44 = vector.shape_cast %43 : vector<1x8x128xf32> to vector<8x128xf32>
    %45 = vector.shape_cast %40 : vector<8x128xf32> to vector<1x8x128xf32>
    tpu.vector_store %arg16[%c0_22, %c0_23, %c0_24], %45 {strides = array<i32>} : memref<2x8x128xf32, #tpu.memory_space<vmem>>, vector<1x8x128xf32>,
    %c0_25 = arith.constant 0 : index
    %c0_26 = arith.constant 0 : index
    %c0_27 = arith.constant 0 : index
    %46 = vector.load %arg15[%c0_25, %c0_26, %c0_27] : memref<2x8x128xf32, #tpu.memory_space<vmem>>, vector<1x8x128xf32>
    %47 = vector.shape_cast %46 : vector<1x8x128xf32> to vector<8x128xf32>
    %48 = vector.shape_cast %42 : vector<8x128xf32> to vector<1x8x128xf32>
    tpu.vector_store %arg15[%c0_25, %c0_26, %c0_27], %48 {strides = array<i32>} : memref<2x8x128xf32, #tpu.memory_space<vmem>>, vector<1x8x128xf32>,
    %c1 = arith.constant 1 : index
    %c0_28 = arith.constant 0 : index
    %c0_29 = arith.constant 0 : index
    %49 = vector.load %arg2[%c1, %c0_28, %c0_29] : memref<2x8x128xf32, #tpu.memory_space<vmem>>, vector<1x8x128xf32>
    %50 = vector.shape_cast %49 : vector<1x8x128xf32> to vector<8x128xf32>
    %c1_30 = arith.constant 1 : index
    %c0_31 = arith.constant 0 : index
    %c0_32 = arith.constant 0 : index
    %51 = vector.load %arg3[%c1_30, %c0_31, %c0_32] : memref<2x8x128xf32, #tpu.memory_space<vmem>>, vector<1x8x128xf32>
    %52 = vector.shape_cast %51 : vector<1x8x128xf32> to vector<8x128xf32>
    %c0_33 = arith.constant 0 : index
    %c0_34 = arith.constant 0 : index
    %53 = vector.load %arg9[%c0_33, %c0_34] : memref<128x512xf32, #tpu.memory_space<vmem>>, vector<128x512xf32>
    %cst_35 = arith.constant dense<0.000000e+00> : vector<8x512xf32>
    %54 = tpu.matmul %42, %53, %cst_35 {dimension_numbers = #tpu.dot_dimension_numbers<[1], [0], [0], [1], [0, 0, 1, 1], [], []>} : vector<8x128xf32>, vector<128x512xf32>, vector<8x512xf32> -> vector<8x512xf32>
    %c0_36 = arith.constant 0 : index
    %c0_37 = arith.constant 0 : index
    %55 = vector.load %arg11[%c0_36, %c0_37] : memref<128x512xf32, #tpu.memory_space<vmem>>, vector<128x512xf32>
    %cst_38 = arith.constant dense<0.000000e+00> : vector<8x512xf32>
    %56 = tpu.matmul %50, %55, %cst_38 {dimension_numbers = #tpu.dot_dimension_numbers<[1], [0], [0], [1], [0, 0, 1, 1], [], []>} : vector<8x128xf32>, vector<128x512xf32>, vector<8x512xf32> -> vector<8x512xf32>
    %57 = arith.addf %54, %56 : vector<8x512xf32>
    %c0_39 = arith.constant 0 : index
    %c0_40 = arith.constant 0 : index
    %58 = vector.load %arg13[%c0_39, %c0_40] : memref<1x512xf32, #tpu.memory_space<vmem>>, vector<1x512xf32>
    %59 = vector.broadcast %58 : vector<1x512xf32> to vector<8x512xf32>
    %60 = arith.addf %57, %59 : vector<8x512xf32>
    %61 = vector.extract_strided_slice %60 {offsets = [0, 0], sizes = [8, 128], strides = [1, 1]} : vector<8x512xf32> to vector<8x128xf32>
    %62 = arith.negf %61 : vector<8x128xf32>
    %63 = math.exp %62 : vector<8x128xf32>
    %cst_41 = arith.constant 1.000000e+00 : f32
    %64 = vector.broadcast %cst_41 : f32 to vector<8x128xf32>
    %65 = arith.addf %64, %63 : vector<8x128xf32>
    %66 = arith.divf %64, %65 : vector<8x128xf32>
    %67 = vector.extract_strided_slice %60 {offsets = [0, 128], sizes = [8, 128], strides = [1, 1]} : vector<8x512xf32> to vector<8x128xf32>
    %68 = arith.negf %67 : vector<8x128xf32>
    %69 = math.exp %68 : vector<8x128xf32>
    %cst_42 = arith.constant 1.000000e+00 : f32
    %70 = vector.broadcast %cst_42 : f32 to vector<8x128xf32>
    %71 = arith.addf %70, %69 : vector<8x128xf32>
    %72 = arith.divf %70, %71 : vector<8x128xf32>
    %73 = vector.extract_strided_slice %60 {offsets = [0, 256], sizes = [8, 128], strides = [1, 1]} : vector<8x512xf32> to vector<8x128xf32>
    %74 = math.tanh %73 : vector<8x128xf32>
    %75 = vector.extract_strided_slice %60 {offsets = [0, 384], sizes = [8, 128], strides = [1, 1]} : vector<8x512xf32> to vector<8x128xf32>
    %76 = arith.negf %75 : vector<8x128xf32>
    %77 = math.exp %76 : vector<8x128xf32>
    %cst_43 = arith.constant 1.000000e+00 : f32
    %78 = vector.broadcast %cst_43 : f32 to vector<8x128xf32>
    %79 = arith.addf %78, %77 : vector<8x128xf32>
    %80 = arith.divf %78, %79 : vector<8x128xf32>
    %81 = arith.mulf %72, %52 : vector<8x128xf32>
    %82 = arith.mulf %66, %74 : vector<8x128xf32>
    %83 = arith.addf %81, %82 : vector<8x128xf32>
    %84 = math.tanh %83 : vector<8x128xf32>
    %85 = arith.mulf %80, %84 : vector<8x128xf32>
    %c1_44 = arith.constant 1 : index
    %c0_45 = arith.constant 0 : index
    %c0_46 = arith.constant 0 : index
    %86 = vector.load %arg16[%c1_44, %c0_45, %c0_46] : memref<2x8x128xf32, #tpu.memory_space<vmem>>, vector<1x8x128xf32>
    %87 = vector.shape_cast %86 : vector<1x8x128xf32> to vector<8x128xf32>
    %88 = vector.shape_cast %83 : vector<8x128xf32> to vector<1x8x128xf32>
    tpu.vector_store %arg16[%c1_44, %c0_45, %c0_46], %88 {strides = array<i32>} : memref<2x8x128xf32, #tpu.memory_space<vmem>>, vector<1x8x128xf32>,
    %c1_47 = arith.constant 1 : index
    %c0_48 = arith.constant 0 : index
    %c0_49 = arith.constant 0 : index
    %89 = vector.load %arg15[%c1_47, %c0_48, %c0_49] : memref<2x8x128xf32, #tpu.memory_space<vmem>>, vector<1x8x128xf32>
    %90 = vector.shape_cast %89 : vector<1x8x128xf32> to vector<8x128xf32>
    %91 = vector.shape_cast %85 : vector<8x128xf32> to vector<1x8x128xf32>
    tpu.vector_store %arg15[%c1_47, %c0_48, %c0_49], %91 {strides = array<i32>} : memref<2x8x128xf32, #tpu.memory_space<vmem>>, vector<1x8x128xf32>,
    %c0_50 = arith.constant 0 : index
    %c0_51 = arith.constant 0 : index
    %92 = vector.load %arg6[%c0_50, %c0_51] : memref<128x128xf32, #tpu.memory_space<vmem>>, vector<128x128xf32>
    %cst_52 = arith.constant dense<0.000000e+00> : vector<8x128xf32>
    %93 = tpu.matmul %85, %92, %cst_52 {dimension_numbers = #tpu.dot_dimension_numbers<[1], [0], [0], [1], [0, 0, 1, 1], [], []>} : vector<8x128xf32>, vector<128x128xf32>, vector<8x128xf32> -> vector<8x128xf32>
    %c0_53 = arith.constant 0 : index
    %c0_54 = arith.constant 0 : index
    %94 = vector.load %arg7[%c0_53, %c0_54] : memref<1x128xf32, #tpu.memory_space<vmem>>, vector<1x128xf32>
    %95 = vector.broadcast %94 : vector<1x128xf32> to vector<8x128xf32>
    %96 = arith.addf %93, %95 : vector<8x128xf32>
    %c0_55 = arith.constant 0 : index
    %c0_56 = arith.constant 0 : index
    %97 = vector.load %arg14[%c0_55, %c0_56] : memref<8x128xf32, #tpu.memory_space<vmem>>, vector<8x128xf32>
    tpu.vector_store %arg14[%c0_55, %c0_56], %96 {strides = array<i32>} : memref<8x128xf32, #tpu.memory_space<vmem>>, vector<8x128xf32>,
    return
  }
  func.func @transform_0(%arg0: i32) -> (i32, i32) {
    %c0_i32 = arith.constant 0 : i32
    %c0_i32_0 = arith.constant 0 : i32
    return %arg0, %c0_i32 : i32, i32
  }
  func.func @transform_1(%arg0: i32) -> (i32, i32, i32) {
    %c0_i32 = arith.constant 0 : i32
    %c0_i32_0 = arith.constant 0 : i32
    %c0_i32_1 = arith.constant 0 : i32
    return %c0_i32, %arg0, %c0_i32_0 : i32, i32, i32
  }
  func.func @transform_2(%arg0: i32) -> (i32, i32, i32) {
    %c0_i32 = arith.constant 0 : i32
    %c0_i32_0 = arith.constant 0 : i32
    %c0_i32_1 = arith.constant 0 : i32
    return %c0_i32, %arg0, %c0_i32_0 : i32, i32, i32
  }
  func.func @transform_3(%arg0: i32) -> (i32, i32) {
    %c0_i32 = arith.constant 0 : i32
    %c0_i32_0 = arith.constant 0 : i32
    %c0_i32_1 = arith.constant 0 : i32
    return %c0_i32, %c0_i32_0 : i32, i32
  }
  func.func @transform_4(%arg0: i32) -> (i32, i32) {
    %c0_i32 = arith.constant 0 : i32
    %c0_i32_0 = arith.constant 0 : i32
    %c0_i32_1 = arith.constant 0 : i32
    return %c0_i32, %c0_i32_0 : i32, i32
  }
  func.func @transform_5(%arg0: i32) -> (i32, i32) {
    %c0_i32 = arith.constant 0 : i32
    %c0_i32_0 = arith.constant 0 : i32
    %c0_i32_1 = arith.constant 0 : i32
    return %c0_i32, %c0_i32_0 : i32, i32
  }
  func.func @transform_6(%arg0: i32) -> (i32, i32) {
    %c0_i32 = arith.constant 0 : i32
    %c0_i32_0 = arith.constant 0 : i32
    %c0_i32_1 = arith.constant 0 : i32
    return %c0_i32, %c0_i32_0 : i32, i32
  }
  func.func @transform_7(%arg0: i32) -> (i32, i32) {
    %c0_i32 = arith.constant 0 : i32
    %c0_i32_0 = arith.constant 0 : i32
    %c0_i32_1 = arith.constant 0 : i32
    return %c0_i32, %c0_i32_0 : i32, i32
  }
  func.func @transform_8(%arg0: i32) -> (i32, i32) {
    %c0_i32 = arith.constant 0 : i32
    %c0_i32_0 = arith.constant 0 : i32
    %c0_i32_1 = arith.constant 0 : i32
    return %c0_i32, %c0_i32_0 : i32, i32
  }
  func.func @transform_9(%arg0: i32) -> (i32, i32) {
    %c0_i32 = arith.constant 0 : i32
    %c0_i32_0 = arith.constant 0 : i32
    %c0_i32_1 = arith.constant 0 : i32
    return %c0_i32, %c0_i32_0 : i32, i32
  }
  func.func @transform_10(%arg0: i32) -> (i32, i32) {
    %c0_i32 = arith.constant 0 : i32
    %c0_i32_0 = arith.constant 0 : i32
    %c0_i32_1 = arith.constant 0 : i32
    return %c0_i32, %c0_i32_0 : i32, i32
  }
  func.func @transform_11(%arg0: i32) -> (i32, i32) {
    %c0_i32 = arith.constant 0 : i32
    %c0_i32_0 = arith.constant 0 : i32
    %c0_i32_1 = arith.constant 0 : i32
    return %c0_i32, %c0_i32_0 : i32, i32
  }
  func.func @transform_12(%arg0: i32) -> (i32, i32) {
    %c0_i32 = arith.constant 0 : i32
    %c0_i32_0 = arith.constant 0 : i32
    %c0_i32_1 = arith.constant 0 : i32
    return %c0_i32, %c0_i32_0 : i32, i32
  }
  func.func @transform_13(%arg0: i32) -> (i32, i32) {
    %c0_i32 = arith.constant 0 : i32
    %c0_i32_0 = arith.constant 0 : i32
    return %arg0, %c0_i32 : i32, i32
  }
  func.func @transform_14(%arg0: i32) -> (i32, i32, i32) {
    %c0_i32 = arith.constant 0 : i32
    %c0_i32_0 = arith.constant 0 : i32
    %c0_i32_1 = arith.constant 0 : i32
    return %c0_i32, %arg0, %c0_i32_0 : i32, i32, i32
  }
  func.func @transform_15(%arg0: i32) -> (i32, i32, i32) {
    %c0_i32 = arith.constant 0 : i32
    %c0_i32_0 = arith.constant 0 : i32
    %c0_i32_1 = arith.constant 0 : i32
    return %c0_i32, %arg0, %c0_i32_0 : i32, i32, i32
  }
}

</mosaic_0001>

<llo_original>
// kernel: decoder_lstm_forward.1
$region0: #{decoder_lstm_forward.1}
  #allocation0 [shape = 'u32[]', space=smem, size = 0x4, offset = 0x4, fixed_abs, tag = 'smem constant byte address 0x4 - core index']
  #allocation1 [shape = 'u32[144,128]{1,0:T(1,128)}', space=vmem, size = 0x12000, scoped, tag = 'internal scratch']
  %s0 = inlined_call_operand.vmem [shape: f32[8,16], index: 0, kind: input, shape index: {}]
  %s1 = inlined_call_operand.vmem [shape: f32[2,8,128], index: 1, kind: input, shape index: {}, may-alias: {1,14}]
  %s2 = inlined_call_operand.vmem [shape: f32[2,8,128], index: 2, kind: input, shape index: {}, may-alias: {2,15}]
  %s3 = inlined_call_operand.vmem [shape: f32[16,32], index: 3, kind: input, shape index: {}]
  %s4 = inlined_call_operand.vmem [shape: f32[1,32], index: 4, kind: input, shape index: {}]
  %s5 = inlined_call_operand.hbm [shape: f32[128,128], index: 5, kind: input, shape index: {}]
  %s6 = inlined_call_operand.vmem [shape: f32[1,128], index: 6, kind: input, shape index: {}]
  %s7 = inlined_call_operand.hbm [shape: f32[32,512], index: 7, kind: input, shape index: {}]
  %s8 = inlined_call_operand.hbm [shape: f32[128,512], index: 8, kind: input, shape index: {}]
  %s9 = inlined_call_operand.hbm [shape: f32[128,512], index: 9, kind: input, shape index: {}]
  %s10 = inlined_call_operand.hbm [shape: f32[128,512], index: 10, kind: input, shape index: {}]
  %s11 = inlined_call_operand.vmem [shape: f32[1,512], index: 11, kind: input, shape index: {}]
  %s12 = inlined_call_operand.vmem [shape: f32[1,512], index: 12, kind: input, shape index: {}]
  %s13 = inlined_call_operand.vmem [shape: f32[8,128], index: 13, kind: output, shape index: {0}]
  %s14 = inlined_call_operand.vmem [shape: f32[2,8,128], index: 14, kind: output, shape index: {1}, may-alias: {1,14}]
  %s15 = inlined_call_operand.vmem [shape: f32[2,8,128], index: 15, kind: output, shape index: {2}, may-alias: {2,15}]
  %16 = xla_tuple %s13, %s14, %s15
  %s17 = sld [smem:[#allocation0]]
  $region98: #{decoder_lstm_forward.1} parent=0
    _
  %s19 = ssub.s32 1, %s17
  %s20 = scalar_select 0, %s19, %s17
  $region1: #{decoder_lstm_forward.1} parent=0
    #allocation2 [shape = 'u8[65536]{0}', space=vmem, size = 0x10000, scoped, tag = 'input window, operand 5, single buffered']
    #allocation3 [shape = 's32[1]{0}', space=sflag, size = 0x4, scoped, tag = 'scoped memory for decoder_lstm_forward.1']
    #allocation4 [shape = 'u8[65536]{0}', space=vmem, size = 0x10000, scoped, tag = 'input window, operand 7, single buffered']
    #allocation5 [shape = 's32[1]{0}', space=sflag, size = 0x4, scoped, tag = 'scoped memory for decoder_lstm_forward.1']
    #allocation6 [shape = 'u8[262144]{0}', space=vmem, size = 0x40000, scoped, tag = 'input window, operand 8, single buffered']
    #allocation7 [shape = 'u8[262144]{0}', space=vmem, size = 0x40000, scoped, tag = 'input window, operand 9, single buffered']
    #allocation8 [shape = 's32[1]{0}', space=sflag, size = 0x4, scoped, tag = 'scoped memory for decoder_lstm_forward.1']
    #allocation9 [shape = 'u8[262144]{0}', space=vmem, size = 0x40000, scoped, tag = 'input window, operand 10, single buffered']
    %21 = vsyncpa [#allocation3], 0
    %22 = vsyncpa [#allocation5], 0
    %23 = vsyncpa [#allocation8], 0
    // Predicated region
    $region2: #{decoder_lstm_forward.1} parent=1 // pred_check
      _
    $region3: #{decoder_lstm_forward.1} parent=1 // pred_check_branch
      %25 = sbr.rel (0) target = $region5
    $region4: #{decoder_lstm_forward.1} parent=1 // pred_region
      _
    $region5: #{decoder_lstm_forward.1} parent=1 // pred_fallthru
      _
    // Predicated region
    $region6: #{decoder_lstm_forward.1} parent=1 // pred_check
      _
    $region7: #{decoder_lstm_forward.1} parent=1 // pred_check_branch
      %27 = sbr.rel (0) target = $region9
    $region8: #{decoder_lstm_forward.1} parent=1 // pred_region
      _
    $region9: #{decoder_lstm_forward.1} parent=1 // pred_fallthru
      _
    // Predicated region
    $region10: #{decoder_lstm_forward.1} parent=1 // pred_check
      _
    $region11: #{decoder_lstm_forward.1} parent=1 // pred_check_branch
      %29 = sbr.rel (0) target = $region13
    $region12: #{decoder_lstm_forward.1} parent=1 // pred_region
      _
    $region13: #{decoder_lstm_forward.1} parent=1 // pred_fallthru
      _
    // Predicated region
    $region14: #{decoder_lstm_forward.1} parent=1 // pred_check
      _
    $region15: #{decoder_lstm_forward.1} parent=1 // pred_check_branch
      %31 = sbr.rel (0) target = $region17
    $region16: #{decoder_lstm_forward.1} parent=1 // pred_region
      _
    $region17: #{decoder_lstm_forward.1} parent=1 // pred_fallthru
      _
    // Predicated region
    $region18: #{decoder_lstm_forward.1} parent=1 // pred_check
      _
    $region19: #{decoder_lstm_forward.1} parent=1 // pred_check_branch
      %33 = sbr.rel (0) target = $region21
    $region20: #{decoder_lstm_forward.1} parent=1 // pred_region
      _
    $region21: #{decoder_lstm_forward.1} parent=1 // pred_fallthru
      _
    // Predicated region
    $region22: #{decoder_lstm_forward.1} parent=1 // pred_check
      _
    $region23: #{decoder_lstm_forward.1} parent=1 // pred_check_branch
      %35 = sbr.rel (0) target = $region25
    $region24: #{decoder_lstm_forward.1} parent=1 // pred_region
      %s37 = ssub.s32 2048, 2048
      %38 = vsyncadd [#allocation3], %s37
      %s39 = sshll.u32 [#allocation2], 4
      %s40 = int_to_ptr.vmem [resolvable:$true] %s39
      %45 = dma.hbm_to_vmem [thread:$0]  %s5, 2048, %s40, [#allocation3], 128, 128, 8
    $region25: #{decoder_lstm_forward.1} parent=1 // pred_fallthru
      _
    // Predicated region
    $region26: #{decoder_lstm_forward.1} parent=1 // pred_check
      _
    $region27: #{decoder_lstm_forward.1} parent=1 // pred_check_branch
      %47 = sbr.rel (0) target = $region29
    $region28: #{decoder_lstm_forward.1} parent=1 // pred_region
      _
    $region29: #{decoder_lstm_forward.1} parent=1 // pred_fallthru
      _
    // Predicated region
    $region30: #{decoder_lstm_forward.1} parent=1 // pred_check
      _
    $region31: #{decoder_lstm_forward.1} parent=1 // pred_check_branch
      %49 = sbr.rel (0) target = $region33
    $region32: #{decoder_lstm_forward.1} parent=1 // pred_region
      %s51 = ssub.s32 2048, 2048
      %52 = vsyncadd [#allocation5], %s51
      %s53 = sshll.u32 [#allocation4], 4
      %s54 = int_to_ptr.vmem [resolvable:$true] %s53
      %59 = dma.hbm_to_vmem [thread:$0]  %s7, 2048, %s54, [#allocation5], 512, 512, 32
    $region33: #{decoder_lstm_forward.1} parent=1 // pred_fallthru
      _
    // Predicated region
    $region34: #{decoder_lstm_forward.1} parent=1 // pred_check
      _
    $region35: #{decoder_lstm_forward.1} parent=1 // pred_check_branch
      %61 = sbr.rel (0) target = $region37
    $region36: #{decoder_lstm_forward.1} parent=1 // pred_region
      %s63 = ssub.s32 8192, 8192
      %64 = vsyncadd [#allocation5], %s63
      %s65 = sshll.u32 [#allocation6], 4
      %s66 = int_to_ptr.vmem [resolvable:$true] %s65
      %71 = dma.hbm_to_vmem [thread:$0]  %s8, 8192, %s66, [#allocation5], 512, 512, 32
    $region37: #{decoder_lstm_forward.1} parent=1 // pred_fallthru
      _
    // Predicated region
    $region38: #{decoder_lstm_forward.1} parent=1 // pred_check
      _
    $region39: #{decoder_lstm_forward.1} parent=1 // pred_check_branch
      %73 = sbr.rel (0) target = $region41
    $region40: #{decoder_lstm_forward.1} parent=1 // pred_region
      %s75 = ssub.s32 8192, 8192
      %76 = vsyncadd [#allocation8], %s75
      %s77 = sshll.u32 [#allocation7], 4
      %s78 = int_to_ptr.vmem [resolvable:$true] %s77
      %83 = dma.hbm_to_vmem [thread:$0]  %s9, 8192, %s78, [#allocation8], 512, 512, 32
    $region41: #{decoder_lstm_forward.1} parent=1 // pred_fallthru
      _
    // Predicated region
    $region42: #{decoder_lstm_forward.1} parent=1 // pred_check
      _
    $region43: #{decoder_lstm_forward.1} parent=1 // pred_check_branch
      %85 = sbr.rel (0) target = $region45
    $region44: #{decoder_lstm_forward.1} parent=1 // pred_region
      %s87 = ssub.s32 8192, 8192
      %88 = vsyncadd [#allocation8], %s87
      %s89 = sshll.u32 [#allocation9], 4
      %s90 = int_to_ptr.vmem [resolvable:$true] %s89
      %95 = dma.hbm_to_vmem [thread:$0]  %s10, 8192, %s90, [#allocation8], 512, 512, 32
    $region45: #{decoder_lstm_forward.1} parent=1 // pred_fallthru
      _
    // Predicated region
    $region46: #{decoder_lstm_forward.1} parent=1 // pred_check
      _
    $region47: #{decoder_lstm_forward.1} parent=1 // pred_check_branch
      %97 = sbr.rel (0) target = $region49
    $region48: #{decoder_lstm_forward.1} parent=1 // pred_region
      _
    $region49: #{decoder_lstm_forward.1} parent=1 // pred_fallthru
      _
    // Predicated region
    $region50: #{decoder_lstm_forward.1} parent=1 // pred_check
      _
    $region51: #{decoder_lstm_forward.1} parent=1 // pred_check_branch
      %99 = sbr.rel (0) target = $region53
    $region52: #{decoder_lstm_forward.1} parent=1 // pred_region
      _
    $region53: #{decoder_lstm_forward.1} parent=1 // pred_fallthru
      _
    // Predicated region
    $region54: #{decoder_lstm_forward.1} parent=1 // pred_check
      _
    $region55: #{decoder_lstm_forward.1} parent=1 // pred_check_branch
      %101 = sbr.rel (0) target = $region57
    $region56: #{decoder_lstm_forward.1} parent=1 // pred_region
      %102 = dma.done [#allocation3], 2048
    $region57: #{decoder_lstm_forward.1} parent=1 // pred_fallthru
      _
    // Predicated region
    $region58: #{decoder_lstm_forward.1} parent=1 // pred_check
      _
    $region59: #{decoder_lstm_forward.1} parent=1 // pred_check_branch
      %104 = sbr.rel (0) target = $region61
    $region60: #{decoder_lstm_forward.1} parent=1 // pred_region
      %105 = dma.done [#allocation5], 2048
    $region61: #{decoder_lstm_forward.1} parent=1 // pred_fallthru
      _
    // Predicated region
    $region62: #{decoder_lstm_forward.1} parent=1 // pred_check
      _
    $region63: #{decoder_lstm_forward.1} parent=1 // pred_check_branch
      %107 = sbr.rel (0) target = $region65
    $region64: #{decoder_lstm_forward.1} parent=1 // pred_region
      %108 = dma.done [#allocation5], 8192
    $region65: #{decoder_lstm_forward.1} parent=1 // pred_fallthru
      _
    // Predicated region
    $region66: #{decoder_lstm_forward.1} parent=1 // pred_check
      _
    $region67: #{decoder_lstm_forward.1} parent=1 // pred_check_branch
      %110 = sbr.rel (0) target = $region69
    $region68: #{decoder_lstm_forward.1} parent=1 // pred_region
      %111 = dma.done [#allocation8], 8192
    $region69: #{decoder_lstm_forward.1} parent=1 // pred_fallthru
      _
    // Predicated region
    $region70: #{decoder_lstm_forward.1} parent=1 // pred_check
      _
    $region71: #{decoder_lstm_forward.1} parent=1 // pred_check_branch
      %113 = sbr.rel (0) target = $region73
    $region72: #{decoder_lstm_forward.1} parent=1 // pred_region
      %114 = dma.done [#allocation8], 8192
    $region73: #{decoder_lstm_forward.1} parent=1 // pred_fallthru
      _
    %v115 = vld [vmem:[%s0] sm:$0xff]
    %v116 = vld [vmem:[%s3] sm:$0xff]
    %v117 = vld [vmem:[%s3 + $0x8] sm:$0xff]
    %v118 = vld [vmem:[%s4] sm:$0x1]
    %v120 = vlaneseq
    %v121 = vshrl.u32 %v120, 7
    %v122 = vsub.s32 0, %v121
    %v123 = vrot.slane %v118, %v122
    %vm125 = vcmask 130048
    %v127 = vsel %vm125, %v115, 0
    %129 = vmatprep.subr.mxu0 0.0
    %130 = vmatpush1.msra.mxu0 %v116
    %131 = vmatprep.subr.mxu0 0.0
    %132 = vmatpush1.msra.mxu0 %v117
    %133 = vmatprep.subr.mxu0 0.0
    %134 = vmatpush1.msra.mxu0 0.0
    %135 = vmatprep.subr.mxu0 0.0
    %136 = vmatpush1.msra.mxu0 0.0
    %137 = vmatprep.subr.mxu0 0.0
    %138 = vmatpush1.msra.mxu0 0.0
    %139 = vmatprep.subr.mxu0 0.0
    %140 = vmatpush1.msra.mxu0 0.0
    %141 = vmatprep.subr.mxu0 0.0
    %142 = vmatpush1.msra.mxu0 0.0
    %143 = vmatprep.subr.mxu0 0.0
    %144 = vmatpush1.msra.mxu0 0.0
    %145 = vmatprep.subr.mxu0 0.0
    %146 = vmatpush1.msra.mxu0 0.0
    %147 = vmatprep.subr.mxu0 0.0
    %148 = vmatpush1.msra.mxu0 0.0
    %149 = vmatprep.subr.mxu0 0.0
    %150 = vmatpush1.msra.mxu0 0.0
    %151 = vmatprep.subr.mxu0 0.0
    %152 = vmatpush1.msra.mxu0 0.0
    %153 = vmatprep.subr.mxu0 0.0
    %154 = vmatpush1.msra.mxu0 0.0
    %155 = vmatprep.subr.mxu0 0.0
    %156 = vmatpush1.msra.mxu0 0.0
    %157 = vmatprep.subr.mxu0 0.0
    %158 = vmatpush1.msra.mxu0 0.0
    %159 = vmatprep.subr.mxu0 0.0
    %160 = vmatpush1.msra.mxu0 0.0
    %161 = vmatprep.subr.mxu0 0.0
    %162 = vmatpush1.msra.mxu0 0.0
    %163 = vmatprep.subr.mxu0 0.0
    %164 = vmatpush1.msra.mxu0 0.0
    %165 = vmatprep.subr.mxu0 0.0
    %166 = vmatpush1.msra.mxu0 0.0
    %167 = vmatprep.subr.mxu0 0.0
    %168 = vmatpush1.msra.mxu0 0.0
    %169 = vmatprep.subr.mxu0 0.0
    %170 = vmatpush1.msra.mxu0 0.0
    %171 = vmatprep.subr.mxu0 0.0
    %172 = vmatpush1.msra.mxu0 0.0
    %173 = vmatprep.subr.mxu0 0.0
    %174 = vmatpush1.msra.mxu0 0.0
    %175 = vmatprep.subr.mxu0 0.0
    %176 = vmatpush1.msra.mxu0 0.0
    %177 = vmatprep.subr.mxu0 0.0
    %178 = vmatpush1.msra.mxu0 0.0
    %179 = vmatprep.subr.mxu0 0.0
    %180 = vmatpush1.msra.mxu0 0.0
    %181 = vmatprep.subr.mxu0 0.0
    %182 = vmatpush1.msra.mxu0 0.0
    %183 = vmatprep.subr.mxu0 0.0
    %184 = vmatpush1.msra.mxu0 0.0
    %185 = vmatprep.subr.mxu0 0.0
    %186 = vmatpush1.msra.mxu0 0.0
    %187 = vmatprep.subr.mxu0 0.0
    %188 = vmatpush1.msra.mxu0 0.0
    %189 = vmatprep.subr.mxu0 0.0
    %190 = vmatpush1.msra.mxu0 0.0
    %191 = vmatprep.subr.mxu0 0.0
    %192 = vmatpush1.msra.mxu0 0.0
    %193 = vmatprep.mubr.f32.mxu0 0.0
    %194 = vmatmul.mubr.f32.gmra.mrb[0].mxu0 %v127
    %v195 = vpop.f32.mrb[0].mxu0
    %v196 = vadd.f32 %v123, %v195
    %v197 = vpop.f32.mrb[0].mxu0
    %198 = vdwg.mxu0
    %v199 = vld [vmem:[%s1] sm:$0xff]
    %v200 = vld [vmem:[%s2] sm:$0xff]
    %v201 = vld [vmem:[#allocation4] sm:$0xff]
    %v202 = vld [vmem:[#allocation4 + $0x8] sm:$0xff]
    %v203 = vld [vmem:[#allocation4 + $0x10] sm:$0xff]
    %v204 = vld [vmem:[#allocation4 + $0x18] sm:$0xff]
    %v205 = vld [vmem:[#allocation4 + $0x20] sm:$0xff]
    %v206 = vld [vmem:[#allocation4 + $0x28] sm:$0xff]
    %v207 = vld [vmem:[#allocation4 + $0x30] sm:$0xff]
    %v208 = vld [vmem:[#allocation4 + $0x38] sm:$0xff]
    %v209 = vld [vmem:[#allocation4 + $0x40] sm:$0xff]
    %v210 = vld [vmem:[#allocation4 + $0x48] sm:$0xff]
    %v211 = vld [vmem:[#allocation4 + $0x50] sm:$0xff]
    %v212 = vld [vmem:[#allocation4 + $0x58] sm:$0xff]
    %v213 = vld [vmem:[#allocation4 + $0x60] sm:$0xff]
    %v214 = vld [vmem:[#allocation4 + $0x68] sm:$0xff]
    %v215 = vld [vmem:[#allocation4 + $0x70] sm:$0xff]
    %v216 = vld [vmem:[#allocation4 + $0x78] sm:$0xff]
    %v217 = vld [vmem:[#allocation7] sm:$0xff]
    %v218 = vld [vmem:[#allocation7 + $0x8] sm:$0xff]
    %v219 = vld [vmem:[#allocation7 + $0x10] sm:$0xff]
    %v220 = vld [vmem:[#allocation7 + $0x18] sm:$0xff]
    %v221 = vld [vmem:[#allocation7 + $0x20] sm:$0xff]
    %v222 = vld [vmem:[#allocation7 + $0x28] sm:$0xff]
    %v223 = vld [vmem:[#allocation7 + $0x30] sm:$0xff]
    %v224 = vld [vmem:[#allocation7 + $0x38] sm:$0xff]
    %v225 = vld [vmem:[#allocation7 + $0x40] sm:$0xff]
    %v226 = vld [vmem:[#allocation7 + $0x48] sm:$0xff]
    %v227 = vld [vmem:[#allocation7 + $0x50] sm:$0xff]
    %v228 = vld [vmem:[#allocation7 + $0x58] sm:$0xff]
    %v229 = vld [vmem:[#allocation7 + $0x60] sm:$0xff]
    %v230 = vld [vmem:[#allocation7 + $0x68] sm:$0xff]
    %v231 = vld [vmem:[#allocation7 + $0x70] sm:$0xff]
    %v232 = vld [vmem:[#allocation7 + $0x78] sm:$0xff]
    %v233 = vld [vmem:[#allocation7 + $0x80] sm:$0xff]
    %v234 = vld [vmem:[#allocation7 + $0x88] sm:$0xff]
    %v235 = vld [vmem:[#allocation7 + $0x90] sm:$0xff]
    %v236 = vld [vmem:[#allocation7 + $0x98] sm:$0xff]
    %v237 = vld [vmem:[#allocation7 + $0xa0] sm:$0xff]
    %v238 = vld [vmem:[#allocation7 + $0xa8] sm:$0xff]
    %v239 = vld [vmem:[#allocation7 + $0xb0] sm:$0xff]
    %v240 = vld [vmem:[#allocation7 + $0xb8] sm:$0xff]
    %v241 = vld [vmem:[#allocation7 + $0xc0] sm:$0xff]
    %v242 = vld [vmem:[#allocation7 + $0xc8] sm:$0xff]
    %v243 = vld [vmem:[#allocation7 + $0xd0] sm:$0xff]
    %v244 = vld [vmem:[#allocation7 + $0xd8] sm:$0xff]
    %v245 = vld [vmem:[#allocation7 + $0xe0] sm:$0xff]
    %v246 = vld [vmem:[#allocation7 + $0xe8] sm:$0xff]
    %v247 = vld [vmem:[#allocation7 + $0xf0] sm:$0xff]
    %v248 = vld [vmem:[#allocation7 + $0xf8] sm:$0xff]
    %v249 = vld [vmem:[#allocation7 + $0x100] sm:$0xff]
    %v250 = vld [vmem:[#allocation7 + $0x108] sm:$0xff]
    %v251 = vld [vmem:[#allocation7 + $0x110] sm:$0xff]
    %v252 = vld [vmem:[#allocation7 + $0x118] sm:$0xff]
    %v253 = vld [vmem:[#allocation7 + $0x120] sm:$0xff]
    %v254 = vld [vmem:[#allocation7 + $0x128] sm:$0xff]
    %v255 = vld [vmem:[#allocation7 + $0x130] sm:$0xff]
    %v256 = vld [vmem:[#allocation7 + $0x138] sm:$0xff]
    %v257 = vld [vmem:[#allocation7 + $0x140] sm:$0xff]
    %v258 = vld [vmem:[#allocation7 + $0x148] sm:$0xff]
    %v259 = vld [vmem:[#allocation7 + $0x150] sm:$0xff]
    %v260 = vld [vmem:[#allocation7 + $0x158] sm:$0xff]
    %v261 = vld [vmem:[#allocation7 + $0x160] sm:$0xff]
    %v262 = vld [vmem:[#allocation7 + $0x168] sm:$0xff]
    %v263 = vld [vmem:[#allocation7 + $0x170] sm:$0xff]
    %v264 = vld [vmem:[#allocation7 + $0x178] sm:$0xff]
    %v265 = vld [vmem:[#allocation7 + $0x180] sm:$0xff]
    %v266 = vld [vmem:[#allocation7 + $0x188] sm:$0xff]
    %v267 = vld [vmem:[#allocation7 + $0x190] sm:$0xff]
    %v268 = vld [vmem:[#allocation7 + $0x198] sm:$0xff]
    %v269 = vld [vmem:[#allocation7 + $0x1a0] sm:$0xff]
    %v270 = vld [vmem:[#allocation7 + $0x1a8] sm:$0xff]
    %v271 = vld [vmem:[#allocation7 + $0x1b0] sm:$0xff]
    %v272 = vld [vmem:[#allocation7 + $0x1b8] sm:$0xff]
    %v273 = vld [vmem:[#allocation7 + $0x1c0] sm:$0xff]
    %v274 = vld [vmem:[#allocation7 + $0x1c8] sm:$0xff]
    %v275 = vld [vmem:[#allocation7 + $0x1d0] sm:$0xff]
    %v276 = vld [vmem:[#allocation7 + $0x1d8] sm:$0xff]
    %v277 = vld [vmem:[#allocation7 + $0x1e0] sm:$0xff]
    %v278 = vld [vmem:[#allocation7 + $0x1e8] sm:$0xff]
    %v279 = vld [vmem:[#allocation7 + $0x1f0] sm:$0xff]
    %v280 = vld [vmem:[#allocation7 + $0x1f8] sm:$0xff]
    %281 = vmatprep.subr.mxu0 %v218
    %282 = vmatpush1.msra.mxu0 %v217
    %283 = vmatprep.subr.mxu0 %v222
    %284 = vmatpush1.msra.mxu0 %v221
    %285 = vmatprep.subr.mxu0 %v226
    %286 = vmatpush1.msra.mxu0 %v225
    %287 = vmatprep.subr.mxu0 %v230
    %288 = vmatpush1.msra.mxu0 %v229
    %289 = vmatprep.subr.mxu0 %v234
    %290 = vmatpush1.msra.mxu0 %v233
    %291 = vmatprep.subr.mxu0 %v238
    %292 = vmatpush1.msra.mxu0 %v237
    %293 = vmatprep.subr.mxu0 %v242
    %294 = vmatpush1.msra.mxu0 %v241
    %295 = vmatprep.subr.mxu0 %v246
    %296 = vmatpush1.msra.mxu0 %v245
    %297 = vmatprep.subr.mxu0 %v250
    %298 = vmatpush1.msra.mxu0 %v249
    %299 = vmatprep.subr.mxu0 %v254
    %300 = vmatpush1.msra.mxu0 %v253
    %301 = vmatprep.subr.mxu0 %v258
    %302 = vmatpush1.msra.mxu0 %v257
    %303 = vmatprep.subr.mxu0 %v262
    %304 = vmatpush1.msra.mxu0 %v261
    %305 = vmatprep.subr.mxu0 %v266
    %306 = vmatpush1.msra.mxu0 %v265
    %307 = vmatprep.subr.mxu0 %v270
    %308 = vmatpush1.msra.mxu0 %v269
    %309 = vmatprep.subr.mxu0 %v274
    %310 = vmatpush1.msra.mxu0 %v273
    %311 = vmatprep.subr.mxu0 %v278
    %312 = vmatpush1.msra.mxu0 %v277
    %313 = vmatprep.subr.mxu0 0.0
    %314 = vmatpush1.msra.mxu0 0.0
    %315 = vmatprep.subr.mxu0 0.0
    %316 = vmatpush1.msra.mxu0 0.0
    %317 = vmatprep.subr.mxu0 0.0
    %318 = vmatpush1.msra.mxu0 0.0
    %319 = vmatprep.subr.mxu0 0.0
    %320 = vmatpush1.msra.mxu0 0.0
    %321 = vmatprep.subr.mxu0 0.0
    %322 = vmatpush1.msra.mxu0 0.0
    %323 = vmatprep.subr.mxu0 0.0
    %324 = vmatpush1.msra.mxu0 0.0
    %325 = vmatprep.subr.mxu0 0.0
    %326 = vmatpush1.msra.mxu0 0.0
    %327 = vmatprep.subr.mxu0 0.0
    %328 = vmatpush1.msra.mxu0 0.0
    %329 = vmatprep.subr.mxu0 0.0
    %330 = vmatpush1.msra.mxu0 0.0
    %331 = vmatprep.subr.mxu0 0.0
    %332 = vmatpush1.msra.mxu0 0.0
    %333 = vmatprep.subr.mxu0 0.0
    %334 = vmatpush1.msra.mxu0 0.0
    %335 = vmatprep.subr.mxu0 0.0
    %336 = vmatpush1.msra.mxu0 0.0
    %337 = vmatprep.subr.mxu0 0.0
    %338 = vmatpush1.msra.mxu0 0.0
    %339 = vmatprep.subr.mxu0 0.0
    %340 = vmatpush1.msra.mxu0 0.0
    %341 = vmatprep.subr.mxu0 0.0
    %342 = vmatpush1.msra.mxu0 0.0
    %343 = vmatprep.subr.mxu0 0.0
    %344 = vmatpush1.msra.mxu0 0.0
    %345 = vmatprep.mubr.f32.mxu0 0.0
    %346 = vmatmul.mubr.f32.gmra.mrb[0].mxu0 %v199
    %v347 = vpop.f32.mrb[0].mxu0
    %v348 = vadd.f32 0.0, %v347
    %v349 = vpop.f32.mrb[0].mxu0
    %v350 = vadd.f32 0.0, %v349
    %351 = vdwg.mxu0
    %352 = vmatprep.subr.mxu0 %v220
    %353 = vmatpush1.msra.mxu0 %v219
    %354 = vmatprep.subr.mxu0 %v224
    %355 = vmatpush1.msra.mxu0 %v223
    %356 = vmatprep.subr.mxu0 %v228
    %357 = vmatpush1.msra.mxu0 %v227
    %358 = vmatprep.subr.mxu0 %v232
    %359 = vmatpush1.msra.mxu0 %v231
    %360 = vmatprep.subr.mxu0 %v236
    %361 = vmatpush1.msra.mxu0 %v235
    %362 = vmatprep.subr.mxu0 %v240
    %363 = vmatpush1.msra.mxu0 %v239
    %364 = vmatprep.subr.mxu0 %v244
    %365 = vmatpush1.msra.mxu0 %v243
    %366 = vmatprep.subr.mxu0 %v248
    %367 = vmatpush1.msra.mxu0 %v247
    %368 = vmatprep.subr.mxu0 %v252
    %369 = vmatpush1.msra.mxu0 %v251
    %370 = vmatprep.subr.mxu0 %v256
    %371 = vmatpush1.msra.mxu0 %v255
    %372 = vmatprep.subr.mxu0 %v260
    %373 = vmatpush1.msra.mxu0 %v259
    %374 = vmatprep.subr.mxu0 %v264
    %375 = vmatpush1.msra.mxu0 %v263
    %376 = vmatprep.subr.mxu0 %v268
    %377 = vmatpush1.msra.mxu0 %v267
    %378 = vmatprep.subr.mxu0 %v272
    %379 = vmatpush1.msra.mxu0 %v271
    %380 = vmatprep.subr.mxu0 %v276
    %381 = vmatpush1.msra.mxu0 %v275
    %382 = vmatprep.subr.mxu0 %v280
    %383 = vmatpush1.msra.mxu0 %v279
    %384 = vmatprep.subr.mxu0 0.0
    %385 = vmatpush1.msra.mxu0 0.0
    %386 = vmatprep.subr.mxu0 0.0
    %387 = vmatpush1.msra.mxu0 0.0
    %388 = vmatprep.subr.mxu0 0.0
    %389 = vmatpush1.msra.mxu0 0.0
    %390 = vmatprep.subr.mxu0 0.0
    %391 = vmatpush1.msra.mxu0 0.0
    %392 = vmatprep.subr.mxu0 0.0
    %393 = vmatpush1.msra.mxu0 0.0
    %394 = vmatprep.subr.mxu0 0.0
    %395 = vmatpush1.msra.mxu0 0.0
    %396 = vmatprep.subr.mxu0 0.0
    %397 = vmatpush1.msra.mxu0 0.0
    %398 = vmatprep.subr.mxu0 0.0
    %399 = vmatpush1.msra.mxu0 0.0
    %400 = vmatprep.subr.mxu0 0.0
    %401 = vmatpush1.msra.mxu0 0.0
    %402 = vmatprep.subr.mxu0 0.0
    %403 = vmatpush1.msra.mxu0 0.0
    %404 = vmatprep.subr.mxu0 0.0
    %405 = vmatpush1.msra.mxu0 0.0
    %406 = vmatprep.subr.mxu0 0.0
    %407 = vmatpush1.msra.mxu0 0.0
    %408 = vmatprep.subr.mxu0 0.0
    %409 = vmatpush1.msra.mxu0 0.0
    %410 = vmatprep.subr.mxu0 0.0
    %411 = vmatpush1.msra.mxu0 0.0
    %412 = vmatprep.subr.mxu0 0.0
    %413 = vmatpush1.msra.mxu0 0.0
    %414 = vmatprep.subr.mxu0 0.0
    %415 = vmatpush1.msra.mxu0 0.0
    %416 = vmatprep.mubr.f32.mxu0 0.0
    %417 = vmatmul.mubr.f32.gmra.mrb[0].mxu0 %v199
    %v418 = vpop.f32.mrb[0].mxu0
    %v419 = vadd.f32 0.0, %v418
    %v420 = vpop.f32.mrb[0].mxu0
    %v421 = vadd.f32 0.0, %v420
    %422 = vdwg.mxu0
    %vm423 = vcmask 261120
    %v425 = vsel %vm423, %v196, 0
    %427 = vmatprep.subr.mxu0 %v202
    %428 = vmatpush1.msra.mxu0 %v201
    %429 = vmatprep.subr.mxu0 %v206
    %430 = vmatpush1.msra.mxu0 %v205
    %431 = vmatprep.subr.mxu0 %v210
    %432 = vmatpush1.msra.mxu0 %v209
    %433 = vmatprep.subr.mxu0 %v214
    %434 = vmatpush1.msra.mxu0 %v213
    %435 = vmatprep.subr.mxu0 0.0
    %436 = vmatpush1.msra.mxu0 0.0
    %437 = vmatprep.subr.mxu0 0.0
    %438 = vmatpush1.msra.mxu0 0.0
    %439 = vmatprep.subr.mxu0 0.0
    %440 = vmatpush1.msra.mxu0 0.0
    %441 = vmatprep.subr.mxu0 0.0
    %442 = vmatpush1.msra.mxu0 0.0
    %443 = vmatprep.subr.mxu0 0.0
    %444 = vmatpush1.msra.mxu0 0.0
    %445 = vmatprep.subr.mxu0 0.0
    %446 = vmatpush1.msra.mxu0 0.0
    %447 = vmatprep.subr.mxu0 0.0
    %448 = vmatpush1.msra.mxu0 0.0
    %449 = vmatprep.subr.mxu0 0.0
    %450 = vmatpush1.msra.mxu0 0.0
    %451 = vmatprep.subr.mxu0 0.0
    %452 = vmatpush1.msra.mxu0 0.0
    %453 = vmatprep.subr.mxu0 0.0
    %454 = vmatpush1.msra.mxu0 0.0
    %455 = vmatprep.subr.mxu0 0.0
    %456 = vmatpush1.msra.mxu0 0.0
    %457 = vmatprep.subr.mxu0 0.0
    %458 = vmatpush1.msra.mxu0 0.0
    %459 = vmatprep.subr.mxu0 0.0
    %460 = vmatpush1.msra.mxu0 0.0
    %461 = vmatprep.subr.mxu0 0.0
    %462 = vmatpush1.msra.mxu0 0.0
    %463 = vmatprep.subr.mxu0 0.0
    %464 = vmatpush1.msra.mxu0 0.0
    %465 = vmatprep.subr.mxu0 0.0
    %466 = vmatpush1.msra.mxu0 0.0
    %467 = vmatprep.subr.mxu0 0.0
    %468 = vmatpush1.msra.mxu0 0.0
    %469 = vmatprep.subr.mxu0 0.0
    %470 = vmatpush1.msra.mxu0 0.0
    %471 = vmatprep.subr.mxu0 0.0
    %472 = vmatpush1.msra.mxu0 0.0
    %473 = vmatprep.subr.mxu0 0.0
    %474 = vmatpush1.msra.mxu0 0.0
    %475 = vmatprep.subr.mxu0 0.0
    %476 = vmatpush1.msra.mxu0 0.0
    %477 = vmatprep.subr.mxu0 0.0
    %478 = vmatpush1.msra.mxu0 0.0
    %479 = vmatprep.subr.mxu0 0.0
    %480 = vmatpush1.msra.mxu0 0.0
    %481 = vmatprep.subr.mxu0 0.0
    %482 = vmatpush1.msra.mxu0 0.0
    %483 = vmatprep.subr.mxu0 0.0
    %484 = vmatpush1.msra.mxu0 0.0
    %485 = vmatprep.subr.mxu0 0.0
    %486 = vmatpush1.msra.mxu0 0.0
    %487 = vmatprep.subr.mxu0 0.0
    %488 = vmatpush1.msra.mxu0 0.0
    %489 = vmatprep.subr.mxu0 0.0
    %490 = vmatpush1.msra.mxu0 0.0
    %491 = vmatprep.mubr.f32.mxu0 0.0
    %492 = vmatmul.mubr.f32.gmra.mrb[0].mxu0 %v425
    %v493 = vpop.f32.mrb[0].mxu0
    %v494 = vadd.f32 %v348, %v493
    %v495 = vpop.f32.mrb[0].mxu0
    %v496 = vadd.f32 %v350, %v495
    %497 = vdwg.mxu0
    %498 = vmatprep.subr.mxu0 %v204
    %499 = vmatpush1.msra.mxu0 %v203
    %500 = vmatprep.subr.mxu0 %v208
    %501 = vmatpush1.msra.mxu0 %v207
    %502 = vmatprep.subr.mxu0 %v212
    %503 = vmatpush1.msra.mxu0 %v211
    %504 = vmatprep.subr.mxu0 %v216
    %505 = vmatpush1.msra.mxu0 %v215
    %506 = vmatprep.subr.mxu0 0.0
    %507 = vmatpush1.msra.mxu0 0.0
    %508 = vmatprep.subr.mxu0 0.0
    %509 = vmatpush1.msra.mxu0 0.0
    %510 = vmatprep.subr.mxu0 0.0
    %511 = vmatpush1.msra.mxu0 0.0
    %512 = vmatprep.subr.mxu0 0.0
    %513 = vmatpush1.msra.mxu0 0.0
    %514 = vmatprep.subr.mxu0 0.0
    %515 = vmatpush1.msra.mxu0 0.0
    %516 = vmatprep.subr.mxu0 0.0
    %517 = vmatpush1.msra.mxu0 0.0
    %518 = vmatprep.subr.mxu0 0.0
    %519 = vmatpush1.msra.mxu0 0.0
    %520 = vmatprep.subr.mxu0 0.0
    %521 = vmatpush1.msra.mxu0 0.0
    %522 = vmatprep.subr.mxu0 0.0
    %523 = vmatpush1.msra.mxu0 0.0
    %524 = vmatprep.subr.mxu0 0.0
    %525 = vmatpush1.msra.mxu0 0.0
    %526 = vmatprep.subr.mxu0 0.0
    %527 = vmatpush1.msra.mxu0 0.0
    %528 = vmatprep.subr.mxu0 0.0
    %529 = vmatpush1.msra.mxu0 0.0
    %530 = vmatprep.subr.mxu0 0.0
    %531 = vmatpush1.msra.mxu0 0.0
    %532 = vmatprep.subr.mxu0 0.0
    %533 = vmatpush1.msra.mxu0 0.0
    %534 = vmatprep.subr.mxu0 0.0
    %535 = vmatpush1.msra.mxu0 0.0
    %536 = vmatprep.subr.mxu0 0.0
    %537 = vmatpush1.msra.mxu0 0.0
    %538 = vmatprep.subr.mxu0 0.0
    %539 = vmatpush1.msra.mxu0 0.0
    %540 = vmatprep.subr.mxu0 0.0
    %541 = vmatpush1.msra.mxu0 0.0
    %542 = vmatprep.subr.mxu0 0.0
    %543 = vmatpush1.msra.mxu0 0.0
    %544 = vmatprep.subr.mxu0 0.0
    %545 = vmatpush1.msra.mxu0 0.0
    %546 = vmatprep.subr.mxu0 0.0
    %547 = vmatpush1.msra.mxu0 0.0
    %548 = vmatprep.subr.mxu0 0.0
    %549 = vmatpush1.msra.mxu0 0.0
    %550 = vmatprep.subr.mxu0 0.0
    %551 = vmatpush1.msra.mxu0 0.0
    %552 = vmatprep.subr.mxu0 0.0
    %553 = vmatpush1.msra.mxu0 0.0
    %554 = vmatprep.subr.mxu0 0.0
    %555 = vmatpush1.msra.mxu0 0.0
    %556 = vmatprep.subr.mxu0 0.0
    %557 = vmatpush1.msra.mxu0 0.0
    %558 = vmatprep.subr.mxu0 0.0
    %559 = vmatpush1.msra.mxu0 0.0
    %560 = vmatprep.subr.mxu0 0.0
    %561 = vmatpush1.msra.mxu0 0.0
    %562 = vmatprep.mubr.f32.mxu0 0.0
    %563 = vmatmul.mubr.f32.gmra.mrb[0].mxu0 %v425
    %v564 = vpop.f32.mrb[0].mxu0
    %v565 = vadd.f32 %v419, %v564
    %v566 = vpop.f32.mrb[0].mxu0
    %v567 = vadd.f32 %v421, %v566
    %568 = vdwg.mxu0
    %v569 = vld [vmem:[%s11] sm:$0xf]
    %v571 = vlaneseq
    %v572 = vshrl.u32 %v571, 7
    %v573 = vsub.s32 0, %v572
    %v574 = vrot.slane %v569, %v573
    %v575 = vlaneseq
    %v576 = vshrl.u32 %v575, 7
    %v577 = vsub.s32 1, %v576
    %v578 = vrot.slane %v569, %v577
    %v579 = vlaneseq
    %v580 = vshrl.u32 %v579, 7
    %v581 = vsub.s32 2, %v580
    %v582 = vrot.slane %v569, %v581
    %v583 = vlaneseq
    %v584 = vshrl.u32 %v583, 7
    %v585 = vsub.s32 3, %v584
    %v586 = vrot.slane %v569, %v585
    %v591 = vadd.f32 %v494, %v574
    %v592 = vadd.f32 %v496, %v578
    %v593 = vadd.f32 %v565, %v582
    %v594 = vadd.f32 %v567, %v586
    %v595 = vxor.u32 %v591, 2147483648
    %v596 = vmul.f32 %v595, 1.442695
    %v597 = vpow.pop %v596
    %v598 = vadd.f32 %v597, 1.0
    %v599 = vrcp.pop %v598
    %v600 = vmul.f32 1.0, %v599
    %v601 = vxor.u32 %v592, 2147483648
    %v602 = vmul.f32 %v601, 1.442695
    %v603 = vpow.pop %v602
    %v604 = vadd.f32 %v603, 1.0
    %v605 = vrcp.pop %v604
    %v606 = vmul.f32 1.0, %v605
    %v607 = vtanh.pop %v593
    %v608 = vxor.u32 %v594, 2147483648
    %v609 = vmul.f32 %v608, 1.442695
    %v610 = vpow.pop %v609
    %v611 = vadd.f32 %v610, 1.0
    %v612 = vrcp.pop %v611
    %v613 = vmul.f32 1.0, %v612
    %v614 = vmul.f32 %v606, %v200
    %v615 = vmul.f32 %v600, %v607
    %v616 = vadd.f32 %v614, %v615
    %v617 = vtanh.pop %v616
    %v618 = vmul.f32 %v613, %v617
    %619 = vst [vmem:[%s15] sm:$0xff] %v616
    %620 = vst [vmem:[%s14] sm:$0xff] %v618
    %s621 = scalar_lea.vmem %s1, 8
    %v622 = vld [vmem:[%s621] sm:$0xff]
    %s623 = scalar_lea.vmem %s2, 8
    %v624 = vld [vmem:[%s623] sm:$0xff]
    %v625 = vld [vmem:[#allocation6] sm:$0xff]
    %v626 = vld [vmem:[#allocation6 + $0x8] sm:$0xff]
    %v627 = vld [vmem:[#allocation6 + $0x10] sm:$0xff]
    %v628 = vld [vmem:[#allocation6 + $0x18] sm:$0xff]
    %v629 = vld [vmem:[#allocation6 + $0x20] sm:$0xff]
    %v630 = vld [vmem:[#allocation6 + $0x28] sm:$0xff]
    %v631 = vld [vmem:[#allocation6 + $0x30] sm:$0xff]
    %v632 = vld [vmem:[#allocation6 + $0x38] sm:$0xff]
    %v633 = vld [vmem:[#allocation6 + $0x40] sm:$0xff]
    %v634 = vld [vmem:[#allocation6 + $0x48] sm:$0xff]
    %v635 = vld [vmem:[#allocation6 + $0x50] sm:$0xff]
    %v636 = vld [vmem:[#allocation6 + $0x58] sm:$0xff]
    %v637 = vld [vmem:[#allocation6 + $0x60] sm:$0xff]
    %v638 = vld [vmem:[#allocation6 + $0x68] sm:$0xff]
    %v639 = vld [vmem:[#allocation6 + $0x70] sm:$0xff]
    %v640 = vld [vmem:[#allocation6 + $0x78] sm:$0xff]
    %v641 = vld [vmem:[#allocation6 + $0x80] sm:$0xff]
    %v642 = vld [vmem:[#allocation6 + $0x88] sm:$0xff]
    %v643 = vld [vmem:[#allocation6 + $0x90] sm:$0xff]
    %v644 = vld [vmem:[#allocation6 + $0x98] sm:$0xff]
    %v645 = vld [vmem:[#allocation6 + $0xa0] sm:$0xff]
    %v646 = vld [vmem:[#allocation6 + $0xa8] sm:$0xff]
    %v647 = vld [vmem:[#allocation6 + $0xb0] sm:$0xff]
    %v648 = vld [vmem:[#allocation6 + $0xb8] sm:$0xff]
    %v649 = vld [vmem:[#allocation6 + $0xc0] sm:$0xff]
    %v650 = vld [vmem:[#allocation6 + $0xc8] sm:$0xff]
    %v651 = vld [vmem:[#allocation6 + $0xd0] sm:$0xff]
    %v652 = vld [vmem:[#allocation6 + $0xd8] sm:$0xff]
    %v653 = vld [vmem:[#allocation6 + $0xe0] sm:$0xff]
    %v654 = vld [vmem:[#allocation6 + $0xe8] sm:$0xff]
    %v655 = vld [vmem:[#allocation6 + $0xf0] sm:$0xff]
    %v656 = vld [vmem:[#allocation6 + $0xf8] sm:$0xff]
    %v657 = vld [vmem:[#allocation6 + $0x100] sm:$0xff]
    %v658 = vld [vmem:[#allocation6 + $0x108] sm:$0xff]
    %v659 = vld [vmem:[#allocation6 + $0x110] sm:$0xff]
    %v660 = vld [vmem:[#allocation6 + $0x118] sm:$0xff]
    %v661 = vld [vmem:[#allocation6 + $0x120] sm:$0xff]
    %v662 = vld [vmem:[#allocation6 + $0x128] sm:$0xff]
    %v663 = vld [vmem:[#allocation6 + $0x130] sm:$0xff]
    %v664 = vld [vmem:[#allocation6 + $0x138] sm:$0xff]
    %v665 = vld [vmem:[#allocation6 + $0x140] sm:$0xff]
    %v666 = vld [vmem:[#allocation6 + $0x148] sm:$0xff]
    %v667 = vld [vmem:[#allocation6 + $0x150] sm:$0xff]
    %v668 = vld [vmem:[#allocation6 + $0x158] sm:$0xff]
    %v669 = vld [vmem:[#allocation6 + $0x160] sm:$0xff]
    %v670 = vld [vmem:[#allocation6 + $0x168] sm:$0xff]
    %v671 = vld [vmem:[#allocation6 + $0x170] sm:$0xff]
    %v672 = vld [vmem:[#allocation6 + $0x178] sm:$0xff]
    %v673 = vld [vmem:[#allocation6 + $0x180] sm:$0xff]
    %v674 = vld [vmem:[#allocation6 + $0x188] sm:$0xff]
    %v675 = vld [vmem:[#allocation6 + $0x190] sm:$0xff]
    %v676 = vld [vmem:[#allocation6 + $0x198] sm:$0xff]
    %v677 = vld [vmem:[#allocation6 + $0x1a0] sm:$0xff]
    %v678 = vld [vmem:[#allocation6 + $0x1a8] sm:$0xff]
    %v679 = vld [vmem:[#allocation6 + $0x1b0] sm:$0xff]
    %v680 = vld [vmem:[#allocation6 + $0x1b8] sm:$0xff]
    %v681 = vld [vmem:[#allocation6 + $0x1c0] sm:$0xff]
    %v682 = vld [vmem:[#allocation6 + $0x1c8] sm:$0xff]
    %v683 = vld [vmem:[#allocation6 + $0x1d0] sm:$0xff]
    %v684 = vld [vmem:[#allocation6 + $0x1d8] sm:$0xff]
    %v685 = vld [vmem:[#allocation6 + $0x1e0] sm:$0xff]
    %v686 = vld [vmem:[#allocation6 + $0x1e8] sm:$0xff]
    %v687 = vld [vmem:[#allocation6 + $0x1f0] sm:$0xff]
    %v688 = vld [vmem:[#allocation6 + $0x1f8] sm:$0xff]
    %v689 = vld [vmem:[#allocation9] sm:$0xff]
    %v690 = vld [vmem:[#allocation9 + $0x8] sm:$0xff]
    %v691 = vld [vmem:[#allocation9 + $0x10] sm:$0xff]
    %v692 = vld [vmem:[#allocation9 + $0x18] sm:$0xff]
    %v693 = vld [vmem:[#allocation9 + $0x20] sm:$0xff]
    %v694 = vld [vmem:[#allocation9 + $0x28] sm:$0xff]
    %v695 = vld [vmem:[#allocation9 + $0x30] sm:$0xff]
    %v696 = vld [vmem:[#allocation9 + $0x38] sm:$0xff]
    %v697 = vld [vmem:[#allocation9 + $0x40] sm:$0xff]
    %v698 = vld [vmem:[#allocation9 + $0x48] sm:$0xff]
    %v699 = vld [vmem:[#allocation9 + $0x50] sm:$0xff]
    %v700 = vld [vmem:[#allocation9 + $0x58] sm:$0xff]
    %v701 = vld [vmem:[#allocation9 + $0x60] sm:$0xff]
    %v702 = vld [vmem:[#allocation9 + $0x68] sm:$0xff]
    %v703 = vld [vmem:[#allocation9 + $0x70] sm:$0xff]
    %v704 = vld [vmem:[#allocation9 + $0x78] sm:$0xff]
    %v705 = vld [vmem:[#allocation9 + $0x80] sm:$0xff]
    %v706 = vld [vmem:[#allocation9 + $0x88] sm:$0xff]
    %v707 = vld [vmem:[#allocation9 + $0x90] sm:$0xff]
    %v708 = vld [vmem:[#allocation9 + $0x98] sm:$0xff]
    %v709 = vld [vmem:[#allocation9 + $0xa0] sm:$0xff]
    %v710 = vld [vmem:[#allocation9 + $0xa8] sm:$0xff]
    %v711 = vld [vmem:[#allocation9 + $0xb0] sm:$0xff]
    %v712 = vld [vmem:[#allocation9 + $0xb8] sm:$0xff]
    %v713 = vld [vmem:[#allocation9 + $0xc0] sm:$0xff]
    %v714 = vld [vmem:[#allocation9 + $0xc8] sm:$0xff]
    %v715 = vld [vmem:[#allocation9 + $0xd0] sm:$0xff]
    %v716 = vld [vmem:[#allocation9 + $0xd8] sm:$0xff]
    %v717 = vld [vmem:[#allocation9 + $0xe0] sm:$0xff]
    %v718 = vld [vmem:[#allocation9 + $0xe8] sm:$0xff]
    %v719 = vld [vmem:[#allocation9 + $0xf0] sm:$0xff]
    %v720 = vld [vmem:[#allocation9 + $0xf8] sm:$0xff]
    %v721 = vld [vmem:[#allocation9 + $0x100] sm:$0xff]
    %v722 = vld [vmem:[#allocation9 + $0x108] sm:$0xff]
    %v723 = vld [vmem:[#allocation9 + $0x110] sm:$0xff]
    %v724 = vld [vmem:[#allocation9 + $0x118] sm:$0xff]
    %v725 = vld [vmem:[#allocation9 + $0x120] sm:$0xff]
    %v726 = vld [vmem:[#allocation9 + $0x128] sm:$0xff]
    %v727 = vld [vmem:[#allocation9 + $0x130] sm:$0xff]
    %v728 = vld [vmem:[#allocation9 + $0x138] sm:$0xff]
    %v729 = vld [vmem:[#allocation9 + $0x140] sm:$0xff]
    %v730 = vld [vmem:[#allocation9 + $0x148] sm:$0xff]
    %v731 = vld [vmem:[#allocation9 + $0x150] sm:$0xff]
    %v732 = vld [vmem:[#allocation9 + $0x158] sm:$0xff]
    %v733 = vld [vmem:[#allocation9 + $0x160] sm:$0xff]
    %v734 = vld [vmem:[#allocation9 + $0x168] sm:$0xff]
    %v735 = vld [vmem:[#allocation9 + $0x170] sm:$0xff]
    %v736 = vld [vmem:[#allocation9 + $0x178] sm:$0xff]
    %v737 = vld [vmem:[#allocation9 + $0x180] sm:$0xff]
    %v738 = vld [vmem:[#allocation9 + $0x188] sm:$0xff]
    %v739 = vld [vmem:[#allocation9 + $0x190] sm:$0xff]
    %v740 = vld [vmem:[#allocation9 + $0x198] sm:$0xff]
    %v741 = vld [vmem:[#allocation9 + $0x1a0] sm:$0xff]
    %v742 = vld [vmem:[#allocation9 + $0x1a8] sm:$0xff]
    %v743 = vld [vmem:[#allocation9 + $0x1b0] sm:$0xff]
    %v744 = vld [vmem:[#allocation9 + $0x1b8] sm:$0xff]
    %v745 = vld [vmem:[#allocation9 + $0x1c0] sm:$0xff]
    %v746 = vld [vmem:[#allocation9 + $0x1c8] sm:$0xff]
    %v747 = vld [vmem:[#allocation9 + $0x1d0] sm:$0xff]
    %v748 = vld [vmem:[#allocation9 + $0x1d8] sm:$0xff]
    %v749 = vld [vmem:[#allocation9 + $0x1e0] sm:$0xff]
    %v750 = vld [vmem:[#allocation9 + $0x1e8] sm:$0xff]
    %v751 = vld [vmem:[#allocation9 + $0x1f0] sm:$0xff]
    %v752 = vld [vmem:[#allocation9 + $0x1f8] sm:$0xff]
    %753 = vmatprep.subr.mxu0 %v690
    %754 = vmatpush1.msra.mxu0 %v689
    %755 = vmatprep.subr.mxu0 %v694
    %756 = vmatpush1.msra.mxu0 %v693
    %757 = vmatprep.subr.mxu0 %v698
    %758 = vmatpush1.msra.mxu0 %v697
    %759 = vmatprep.subr.mxu0 %v702
    %760 = vmatpush1.msra.mxu0 %v701
    %761 = vmatprep.subr.mxu0 %v706
    %762 = vmatpush1.msra.mxu0 %v705
    %763 = vmatprep.subr.mxu0 %v710
    %764 = vmatpush1.msra.mxu0 %v709
    %765 = vmatprep.subr.mxu0 %v714
    %766 = vmatpush1.msra.mxu0 %v713
    %767 = vmatprep.subr.mxu0 %v718
    %768 = vmatpush1.msra.mxu0 %v717
    %769 = vmatprep.subr.mxu0 %v722
    %770 = vmatpush1.msra.mxu0 %v721
    %771 = vmatprep.subr.mxu0 %v726
    %772 = vmatpush1.msra.mxu0 %v725
    %773 = vmatprep.subr.mxu0 %v730
    %774 = vmatpush1.msra.mxu0 %v729
    %775 = vmatprep.subr.mxu0 %v734
    %776 = vmatpush1.msra.mxu0 %v733
    %777 = vmatprep.subr.mxu0 %v738
    %778 = vmatpush1.msra.mxu0 %v737
    %779 = vmatprep.subr.mxu0 %v742
    %780 = vmatpush1.msra.mxu0 %v741
    %781 = vmatprep.subr.mxu0 %v746
    %782 = vmatpush1.msra.mxu0 %v745
    %783 = vmatprep.subr.mxu0 %v750
    %784 = vmatpush1.msra.mxu0 %v749
    %785 = vmatprep.subr.mxu0 0.0
    %786 = vmatpush1.msra.mxu0 0.0
    %787 = vmatprep.subr.mxu0 0.0
    %788 = vmatpush1.msra.mxu0 0.0
    %789 = vmatprep.subr.mxu0 0.0
    %790 = vmatpush1.msra.mxu0 0.0
    %791 = vmatprep.subr.mxu0 0.0
    %792 = vmatpush1.msra.mxu0 0.0
    %793 = vmatprep.subr.mxu0 0.0
    %794 = vmatpush1.msra.mxu0 0.0
    %795 = vmatprep.subr.mxu0 0.0
    %796 = vmatpush1.msra.mxu0 0.0
    %797 = vmatprep.subr.mxu0 0.0
    %798 = vmatpush1.msra.mxu0 0.0
    %799 = vmatprep.subr.mxu0 0.0
    %800 = vmatpush1.msra.mxu0 0.0
    %801 = vmatprep.subr.mxu0 0.0
    %802 = vmatpush1.msra.mxu0 0.0
    %803 = vmatprep.subr.mxu0 0.0
    %804 = vmatpush1.msra.mxu0 0.0
    %805 = vmatprep.subr.mxu0 0.0
    %806 = vmatpush1.msra.mxu0 0.0
    %807 = vmatprep.subr.mxu0 0.0
    %808 = vmatpush1.msra.mxu0 0.0
    %809 = vmatprep.subr.mxu0 0.0
    %810 = vmatpush1.msra.mxu0 0.0
    %811 = vmatprep.subr.mxu0 0.0
    %812 = vmatpush1.msra.mxu0 0.0
    %813 = vmatprep.subr.mxu0 0.0
    %814 = vmatpush1.msra.mxu0 0.0
    %815 = vmatprep.subr.mxu0 0.0
    %816 = vmatpush1.msra.mxu0 0.0
    %817 = vmatprep.mubr.f32.mxu0 0.0
    %818 = vmatmul.mubr.f32.gmra.mrb[0].mxu0 %v622
    %v819 = vpop.f32.mrb[0].mxu0
    %v820 = vadd.f32 0.0, %v819
    %v821 = vpop.f32.mrb[0].mxu0
    %v822 = vadd.f32 0.0, %v821
    %823 = vdwg.mxu0
    %824 = vmatprep.subr.mxu0 %v692
    %825 = vmatpush1.msra.mxu0 %v691
    %826 = vmatprep.subr.mxu0 %v696
    %827 = vmatpush1.msra.mxu0 %v695
    %828 = vmatprep.subr.mxu0 %v700
    %829 = vmatpush1.msra.mxu0 %v699
    %830 = vmatprep.subr.mxu0 %v704
    %831 = vmatpush1.msra.mxu0 %v703
    %832 = vmatprep.subr.mxu0 %v708
    %833 = vmatpush1.msra.mxu0 %v707
    %834 = vmatprep.subr.mxu0 %v712
    %835 = vmatpush1.msra.mxu0 %v711
    %836 = vmatprep.subr.mxu0 %v716
    %837 = vmatpush1.msra.mxu0 %v715
    %838 = vmatprep.subr.mxu0 %v720
    %839 = vmatpush1.msra.mxu0 %v719
    %840 = vmatprep.subr.mxu0 %v724
    %841 = vmatpush1.msra.mxu0 %v723
    %842 = vmatprep.subr.mxu0 %v728
    %843 = vmatpush1.msra.mxu0 %v727
    %844 = vmatprep.subr.mxu0 %v732
    %845 = vmatpush1.msra.mxu0 %v731
    %846 = vmatprep.subr.mxu0 %v736
    %847 = vmatpush1.msra.mxu0 %v735
    %848 = vmatprep.subr.mxu0 %v740
    %849 = vmatpush1.msra.mxu0 %v739
    %850 = vmatprep.subr.mxu0 %v744
    %851 = vmatpush1.msra.mxu0 %v743
    %852 = vmatprep.subr.mxu0 %v748
    %853 = vmatpush1.msra.mxu0 %v747
    %854 = vmatprep.subr.mxu0 %v752
    %855 = vmatpush1.msra.mxu0 %v751
    %856 = vmatprep.subr.mxu0 0.0
    %857 = vmatpush1.msra.mxu0 0.0
    %858 = vmatprep.subr.mxu0 0.0
    %859 = vmatpush1.msra.mxu0 0.0
    %860 = vmatprep.subr.mxu0 0.0
    %861 = vmatpush1.msra.mxu0 0.0
    %862 = vmatprep.subr.mxu0 0.0
    %863 = vmatpush1.msra.mxu0 0.0
    %864 = vmatprep.subr.mxu0 0.0
    %865 = vmatpush1.msra.mxu0 0.0
    %866 = vmatprep.subr.mxu0 0.0
    %867 = vmatpush1.msra.mxu0 0.0
    %868 = vmatprep.subr.mxu0 0.0
    %869 = vmatpush1.msra.mxu0 0.0
    %870 = vmatprep.subr.mxu0 0.0
    %871 = vmatpush1.msra.mxu0 0.0
    %872 = vmatprep.subr.mxu0 0.0
    %873 = vmatpush1.msra.mxu0 0.0
    %874 = vmatprep.subr.mxu0 0.0
    %875 = vmatpush1.msra.mxu0 0.0
    %876 = vmatprep.subr.mxu0 0.0
    %877 = vmatpush1.msra.mxu0 0.0
    %878 = vmatprep.subr.mxu0 0.0
    %879 = vmatpush1.msra.mxu0 0.0
    %880 = vmatprep.subr.mxu0 0.0
    %881 = vmatpush1.msra.mxu0 0.0
    %882 = vmatprep.subr.mxu0 0.0
    %883 = vmatpush1.msra.mxu0 0.0
    %884 = vmatprep.subr.mxu0 0.0
    %885 = vmatpush1.msra.mxu0 0.0
    %886 = vmatprep.subr.mxu0 0.0
    %887 = vmatpush1.msra.mxu0 0.0
    %888 = vmatprep.mubr.f32.mxu0 0.0
    %889 = vmatmul.mubr.f32.gmra.mrb[0].mxu0 %v622
    %v890 = vpop.f32.mrb[0].mxu0
    %v891 = vadd.f32 0.0, %v890
    %v892 = vpop.f32.mrb[0].mxu0
    %v893 = vadd.f32 0.0, %v892
    %894 = vdwg.mxu0
    %895 = vmatprep.subr.mxu0 %v626
    %896 = vmatpush1.msra.mxu0 %v625
    %897 = vmatprep.subr.mxu0 %v630
    %898 = vmatpush1.msra.mxu0 %v629
    %899 = vmatprep.subr.mxu0 %v634
    %900 = vmatpush1.msra.mxu0 %v633
    %901 = vmatprep.subr.mxu0 %v638
    %902 = vmatpush1.msra.mxu0 %v637
    %903 = vmatprep.subr.mxu0 %v642
    %904 = vmatpush1.msra.mxu0 %v641
    %905 = vmatprep.subr.mxu0 %v646
    %906 = vmatpush1.msra.mxu0 %v645
    %907 = vmatprep.subr.mxu0 %v650
    %908 = vmatpush1.msra.mxu0 %v649
    %909 = vmatprep.subr.mxu0 %v654
    %910 = vmatpush1.msra.mxu0 %v653
    %911 = vmatprep.subr.mxu0 %v658
    %912 = vmatpush1.msra.mxu0 %v657
    %913 = vmatprep.subr.mxu0 %v662
    %914 = vmatpush1.msra.mxu0 %v661
    %915 = vmatprep.subr.mxu0 %v666
    %916 = vmatpush1.msra.mxu0 %v665
    %917 = vmatprep.subr.mxu0 %v670
    %918 = vmatpush1.msra.mxu0 %v669
    %919 = vmatprep.subr.mxu0 %v674
    %920 = vmatpush1.msra.mxu0 %v673
    %921 = vmatprep.subr.mxu0 %v678
    %922 = vmatpush1.msra.mxu0 %v677
    %923 = vmatprep.subr.mxu0 %v682
    %924 = vmatpush1.msra.mxu0 %v681
    %925 = vmatprep.subr.mxu0 %v686
    %926 = vmatpush1.msra.mxu0 %v685
    %927 = vmatprep.subr.mxu0 0.0
    %928 = vmatpush1.msra.mxu0 0.0
    %929 = vmatprep.subr.mxu0 0.0
    %930 = vmatpush1.msra.mxu0 0.0
    %931 = vmatprep.subr.mxu0 0.0
    %932 = vmatpush1.msra.mxu0 0.0
    %933 = vmatprep.subr.mxu0 0.0
    %934 = vmatpush1.msra.mxu0 0.0
    %935 = vmatprep.subr.mxu0 0.0
    %936 = vmatpush1.msra.mxu0 0.0
    %937 = vmatprep.subr.mxu0 0.0
    %938 = vmatpush1.msra.mxu0 0.0
    %939 = vmatprep.subr.mxu0 0.0
    %940 = vmatpush1.msra.mxu0 0.0
    %941 = vmatprep.subr.mxu0 0.0
    %942 = vmatpush1.msra.mxu0 0.0
    %943 = vmatprep.subr.mxu0 0.0
    %944 = vmatpush1.msra.mxu0 0.0
    %945 = vmatprep.subr.mxu0 0.0
    %946 = vmatpush1.msra.mxu0 0.0
    %947 = vmatprep.subr.mxu0 0.0
    %948 = vmatpush1.msra.mxu0 0.0
    %949 = vmatprep.subr.mxu0 0.0
    %950 = vmatpush1.msra.mxu0 0.0
    %951 = vmatprep.subr.mxu0 0.0
    %952 = vmatpush1.msra.mxu0 0.0
    %953 = vmatprep.subr.mxu0 0.0
    %954 = vmatpush1.msra.mxu0 0.0
    %955 = vmatprep.subr.mxu0 0.0
    %956 = vmatpush1.msra.mxu0 0.0
    %957 = vmatprep.subr.mxu0 0.0
    %958 = vmatpush1.msra.mxu0 0.0
    %959 = vmatprep.mubr.f32.mxu0 0.0
    %960 = vmatmul.mubr.f32.gmra.mrb[0].mxu0 %v618
    %v961 = vpop.f32.mrb[0].mxu0
    %v962 = vadd.f32 %v820, %v961
    %v963 = vpop.f32.mrb[0].mxu0
    %v964 = vadd.f32 %v822, %v963
    %965 = vdwg.mxu0
    %966 = vmatprep.subr.mxu0 %v628
    %967 = vmatpush1.msra.mxu0 %v627
    %968 = vmatprep.subr.mxu0 %v632
    %969 = vmatpush1.msra.mxu0 %v631
    %970 = vmatprep.subr.mxu0 %v636
    %971 = vmatpush1.msra.mxu0 %v635
    %972 = vmatprep.subr.mxu0 %v640
    %973 = vmatpush1.msra.mxu0 %v639
    %974 = vmatprep.subr.mxu0 %v644
    %975 = vmatpush1.msra.mxu0 %v643
    %976 = vmatprep.subr.mxu0 %v648
    %977 = vmatpush1.msra.mxu0 %v647
    %978 = vmatprep.subr.mxu0 %v652
    %979 = vmatpush1.msra.mxu0 %v651
    %980 = vmatprep.subr.mxu0 %v656
    %981 = vmatpush1.msra.mxu0 %v655
    %982 = vmatprep.subr.mxu0 %v660
    %983 = vmatpush1.msra.mxu0 %v659
    %984 = vmatprep.subr.mxu0 %v664
    %985 = vmatpush1.msra.mxu0 %v663
    %986 = vmatprep.subr.mxu0 %v668
    %987 = vmatpush1.msra.mxu0 %v667
    %988 = vmatprep.subr.mxu0 %v672
    %989 = vmatpush1.msra.mxu0 %v671
    %990 = vmatprep.subr.mxu0 %v676
    %991 = vmatpush1.msra.mxu0 %v675
    %992 = vmatprep.subr.mxu0 %v680
    %993 = vmatpush1.msra.mxu0 %v679
    %994 = vmatprep.subr.mxu0 %v684
    %995 = vmatpush1.msra.mxu0 %v683
    %996 = vmatprep.subr.mxu0 %v688
    %997 = vmatpush1.msra.mxu0 %v687
    %998 = vmatprep.subr.mxu0 0.0
    %999 = vmatpush1.msra.mxu0 0.0
    %1000 = vmatprep.subr.mxu0 0.0
    %1001 = vmatpush1.msra.mxu0 0.0
    %1002 = vmatprep.subr.mxu0 0.0
    %1003 = vmatpush1.msra.mxu0 0.0
    %1004 = vmatprep.subr.mxu0 0.0
    %1005 = vmatpush1.msra.mxu0 0.0
    %1006 = vmatprep.subr.mxu0 0.0
    %1007 = vmatpush1.msra.mxu0 0.0
    %1008 = vmatprep.subr.mxu0 0.0
    %1009 = vmatpush1.msra.mxu0 0.0
    %1010 = vmatprep.subr.mxu0 0.0
    %1011 = vmatpush1.msra.mxu0 0.0
    %1012 = vmatprep.subr.mxu0 0.0
    %1013 = vmatpush1.msra.mxu0 0.0
    %1014 = vmatprep.subr.mxu0 0.0
    %1015 = vmatpush1.msra.mxu0 0.0
    %1016 = vmatprep.subr.mxu0 0.0
    %1017 = vmatpush1.msra.mxu0 0.0
    %1018 = vmatprep.subr.mxu0 0.0
    %1019 = vmatpush1.msra.mxu0 0.0
    %1020 = vmatprep.subr.mxu0 0.0
    %1021 = vmatpush1.msra.mxu0 0.0
    %1022 = vmatprep.subr.mxu0 0.0
    %1023 = vmatpush1.msra.mxu0 0.0
    %1024 = vmatprep.subr.mxu0 0.0
    %1025 = vmatpush1.msra.mxu0 0.0
    %1026 = vmatprep.subr.mxu0 0.0
    %1027 = vmatpush1.msra.mxu0 0.0
    %1028 = vmatprep.subr.mxu0 0.0
    %1029 = vmatpush1.msra.mxu0 0.0
    %1030 = vmatprep.mubr.f32.mxu0 0.0
    %1031 = vmatmul.mubr.f32.gmra.mrb[0].mxu0 %v618
    %v1032 = vpop.f32.mrb[0].mxu0
    %v1033 = vadd.f32 %v891, %v1032
    %v1034 = vpop.f32.mrb[0].mxu0
    %v1035 = vadd.f32 %v893, %v1034
    %1036 = vdwg.mxu0
    %v1037 = vld [vmem:[%s12] sm:$0xf]
    %v1039 = vlaneseq
    %v1040 = vshrl.u32 %v1039, 7
    %v1041 = vsub.s32 0, %v1040
    %v1042 = vrot.slane %v1037, %v1041
    %v1043 = vlaneseq
    %v1044 = vshrl.u32 %v1043, 7
    %v1045 = vsub.s32 1, %v1044
    %v1046 = vrot.slane %v1037, %v1045
    %v1047 = vlaneseq
    %v1048 = vshrl.u32 %v1047, 7
    %v1049 = vsub.s32 2, %v1048
    %v1050 = vrot.slane %v1037, %v1049
    %v1051 = vlaneseq
    %v1052 = vshrl.u32 %v1051, 7
    %v1053 = vsub.s32 3, %v1052
    %v1054 = vrot.slane %v1037, %v1053
    %v1059 = vadd.f32 %v962, %v1042
    %v1060 = vadd.f32 %v964, %v1046
    %v1061 = vadd.f32 %v1033, %v1050
    %v1062 = vadd.f32 %v1035, %v1054
    %v1063 = vxor.u32 %v1059, 2147483648
    %v1064 = vmul.f32 %v1063, 1.442695
    %v1065 = vpow.pop %v1064
    %v1066 = vadd.f32 %v1065, 1.0
    %v1067 = vrcp.pop %v1066
    %v1068 = vmul.f32 1.0, %v1067
    %v1069 = vxor.u32 %v1060, 2147483648
    %v1070 = vmul.f32 %v1069, 1.442695
    %v1071 = vpow.pop %v1070
    %v1072 = vadd.f32 %v1071, 1.0
    %v1073 = vrcp.pop %v1072
    %v1074 = vmul.f32 1.0, %v1073
    %v1075 = vtanh.pop %v1061
    %v1076 = vxor.u32 %v1062, 2147483648
    %v1077 = vmul.f32 %v1076, 1.442695
    %v1078 = vpow.pop %v1077
    %v1079 = vadd.f32 %v1078, 1.0
    %v1080 = vrcp.pop %v1079
    %v1081 = vmul.f32 1.0, %v1080
    %v1082 = vmul.f32 %v1074, %v624
    %v1083 = vmul.f32 %v1068, %v1075
    %v1084 = vadd.f32 %v1082, %v1083
    %v1085 = vtanh.pop %v1084
    %v1086 = vmul.f32 %v1081, %v1085
    %s1087 = scalar_lea.vmem %s15, 8
    %1088 = vst [vmem:[%s1087] sm:$0xff] %v1084
    %s1089 = scalar_lea.vmem %s14, 8
    %1090 = vst [vmem:[%s1089] sm:$0xff] %v1086
    %v1091 = vld [vmem:[#allocation2] sm:$0xff]
    %v1092 = vld [vmem:[#allocation2 + $0x8] sm:$0xff]
    %v1093 = vld [vmem:[#allocation2 + $0x10] sm:$0xff]
    %v1094 = vld [vmem:[#allocation2 + $0x18] sm:$0xff]
    %v1095 = vld [vmem:[#allocation2 + $0x20] sm:$0xff]
    %v1096 = vld [vmem:[#allocation2 + $0x28] sm:$0xff]
    %v1097 = vld [vmem:[#allocation2 + $0x30] sm:$0xff]
    %v1098 = vld [vmem:[#allocation2 + $0x38] sm:$0xff]
    %v1099 = vld [vmem:[#allocation2 + $0x40] sm:$0xff]
    %v1100 = vld [vmem:[#allocation2 + $0x48] sm:$0xff]
    %v1101 = vld [vmem:[#allocation2 + $0x50] sm:$0xff]
    %v1102 = vld [vmem:[#allocation2 + $0x58] sm:$0xff]
    %v1103 = vld [vmem:[#allocation2 + $0x60] sm:$0xff]
    %v1104 = vld [vmem:[#allocation2 + $0x68] sm:$0xff]
    %v1105 = vld [vmem:[#allocation2 + $0x70] sm:$0xff]
    %v1106 = vld [vmem:[#allocation2 + $0x78] sm:$0xff]
    %v1107 = vld [vmem:[%s6] sm:$0x1]
    %v1109 = vlaneseq
    %v1110 = vshrl.u32 %v1109, 7
    %v1111 = vsub.s32 0, %v1110
    %v1112 = vrot.slane %v1107, %v1111
    %1114 = vmatprep.subr.mxu0 0.0
    %1115 = vmatpush1.msra.mxu0 %v1091
    %1116 = vmatprep.subr.mxu0 0.0
    %1117 = vmatpush1.msra.mxu0 %v1092
    %1118 = vmatprep.subr.mxu0 0.0
    %1119 = vmatpush1.msra.mxu0 %v1093
    %1120 = vmatprep.subr.mxu0 0.0
    %1121 = vmatpush1.msra.mxu0 %v1094
    %1122 = vmatprep.subr.mxu0 0.0
    %1123 = vmatpush1.msra.mxu0 %v1095
    %1124 = vmatprep.subr.mxu0 0.0
    %1125 = vmatpush1.msra.mxu0 %v1096
    %1126 = vmatprep.subr.mxu0 0.0
    %1127 = vmatpush1.msra.mxu0 %v1097
    %1128 = vmatprep.subr.mxu0 0.0
    %1129 = vmatpush1.msra.mxu0 %v1098
    %1130 = vmatprep.subr.mxu0 0.0
    %1131 = vmatpush1.msra.mxu0 %v1099
    %1132 = vmatprep.subr.mxu0 0.0
    %1133 = vmatpush1.msra.mxu0 %v1100
    %1134 = vmatprep.subr.mxu0 0.0
    %1135 = vmatpush1.msra.mxu0 %v1101
    %1136 = vmatprep.subr.mxu0 0.0
    %1137 = vmatpush1.msra.mxu0 %v1102
    %1138 = vmatprep.subr.mxu0 0.0
    %1139 = vmatpush1.msra.mxu0 %v1103
    %1140 = vmatprep.subr.mxu0 0.0
    %1141 = vmatpush1.msra.mxu0 %v1104
    %1142 = vmatprep.subr.mxu0 0.0
    %1143 = vmatpush1.msra.mxu0 %v1105
    %1144 = vmatprep.subr.mxu0 0.0
    %1145 = vmatpush1.msra.mxu0 %v1106
    %1146 = vmatprep.subr.mxu0 0.0
    %1147 = vmatpush1.msra.mxu0 0.0
    %1148 = vmatprep.subr.mxu0 0.0
    %1149 = vmatpush1.msra.mxu0 0.0
    %1150 = vmatprep.subr.mxu0 0.0
    %1151 = vmatpush1.msra.mxu0 0.0
    %1152 = vmatprep.subr.mxu0 0.0
    %1153 = vmatpush1.msra.mxu0 0.0
    %1154 = vmatprep.subr.mxu0 0.0
    %1155 = vmatpush1.msra.mxu0 0.0
    %1156 = vmatprep.subr.mxu0 0.0
    %1157 = vmatpush1.msra.mxu0 0.0
    %1158 = vmatprep.subr.mxu0 0.0
    %1159 = vmatpush1.msra.mxu0 0.0
    %1160 = vmatprep.subr.mxu0 0.0
    %1161 = vmatpush1.msra.mxu0 0.0
    %1162 = vmatprep.subr.mxu0 0.0
    %1163 = vmatpush1.msra.mxu0 0.0
    %1164 = vmatprep.subr.mxu0 0.0
    %1165 = vmatpush1.msra.mxu0 0.0
    %1166 = vmatprep.subr.mxu0 0.0
    %1167 = vmatpush1.msra.mxu0 0.0
    %1168 = vmatprep.subr.mxu0 0.0
    %1169 = vmatpush1.msra.mxu0 0.0
    %1170 = vmatprep.subr.mxu0 0.0
    %1171 = vmatpush1.msra.mxu0 0.0
    %1172 = vmatprep.subr.mxu0 0.0
    %1173 = vmatpush1.msra.mxu0 0.0
    %1174 = vmatprep.subr.mxu0 0.0
    %1175 = vmatpush1.msra.mxu0 0.0
    %1176 = vmatprep.subr.mxu0 0.0
    %1177 = vmatpush1.msra.mxu0 0.0
    %1178 = vmatprep.mubr.f32.mxu0 0.0
    %1179 = vmatmul.mubr.f32.gmra.mrb[0].mxu0 %v1086
    %v1180 = vpop.f32.mrb[0].mxu0
    %v1181 = vadd.f32 %v1112, %v1180
    %v1182 = vpop.f32.mrb[0].mxu0
    %1183 = vdwg.mxu0
    %1184 = vst [vmem:[%s13] sm:$0xff] %v1181
    // Predicated region
    $region74: #{decoder_lstm_forward.1} parent=1 // pred_check
      _
    $region75: #{decoder_lstm_forward.1} parent=1 // pred_check_branch
      %1186 = sbr.rel (0) target = $region77
    $region76: #{decoder_lstm_forward.1} parent=1 // pred_region
      _
    $region77: #{decoder_lstm_forward.1} parent=1 // pred_fallthru
      _
    // Predicated region
    $region78: #{decoder_lstm_forward.1} parent=1 // pred_check
      _
    $region79: #{decoder_lstm_forward.1} parent=1 // pred_check_branch
      %1188 = sbr.rel (0) target = $region81
    $region80: #{decoder_lstm_forward.1} parent=1 // pred_region
      _
    $region81: #{decoder_lstm_forward.1} parent=1 // pred_fallthru
      _
    // Predicated region
    $region82: #{decoder_lstm_forward.1} parent=1 // pred_check
      _
    $region83: #{decoder_lstm_forward.1} parent=1 // pred_check_branch
      %1190 = sbr.rel (0) target = $region85
    $region84: #{decoder_lstm_forward.1} parent=1 // pred_region
      _
    $region85: #{decoder_lstm_forward.1} parent=1 // pred_fallthru
      _
    // Predicated region
    $region86: #{decoder_lstm_forward.1} parent=1 // pred_check
      _
    $region87: #{decoder_lstm_forward.1} parent=1 // pred_check_branch
      %1192 = sbr.rel (0) target = $region89
    $region88: #{decoder_lstm_forward.1} parent=1 // pred_region
      _
    $region89: #{decoder_lstm_forward.1} parent=1 // pred_fallthru
      _
    // Predicated region
    $region90: #{decoder_lstm_forward.1} parent=1 // pred_check
      _
    $region91: #{decoder_lstm_forward.1} parent=1 // pred_check_branch
      %1194 = sbr.rel (0) target = $region93
    $region92: #{decoder_lstm_forward.1} parent=1 // pred_region
      _
    $region93: #{decoder_lstm_forward.1} parent=1 // pred_fallthru
      _
    // Predicated region
    $region94: #{decoder_lstm_forward.1} parent=1 // pred_check
      _
    $region95: #{decoder_lstm_forward.1} parent=1 // pred_check_branch
      %1196 = sbr.rel (0) target = $region97
    $region96: #{decoder_lstm_forward.1} parent=1 // pred_region
      _
    $region97: #{decoder_lstm_forward.1} parent=1 // pred_fallthru
      _
    %1197 = vsyncpa [#allocation3], 1
    %1198 = vsyncpa [#allocation5], 1
    %1199 = vsyncpa [#allocation8], 1

</llo_original>
